<compile_context>
chip_gen: v6e
topology: v6e:2x2x1
jax: 0.10.0
libtpu: 0.0.40
codegen_flags: <defaults>
</compile_context>

<pallas_src>
import functools

import jax
import jax.numpy as jnp
from jax.experimental import pallas as pl
from jax.experimental.pallas import tpu as pltpu


def _tpu_config():
    """Best-effort hardware detection with safe fallbacks.

    Returns (vmem_capacity_bytes, softmax/elementwise dtype)."""
    kind = ""
    try:
        kind = jax.devices()[0].device_kind.lower()
    except Exception:
        pass
    vmem = None
    try:
        vmem = int(getattr(pltpu.get_tpu_info(), "vmem_capacity_bytes"))
    except Exception:
        vmem = None
    if vmem is None:
        # v7x has 64 MiB / TensorCore; v4/v5e/v5p/v6e have 128 MiB.  Unknown -> conservative.
        if ("v7" in kind) or ("7x" in kind) or (not kind):
            vmem = 64 * 1024 * 1024
        else:
            vmem = 128 * 1024 * 1024
    # bf16 VPU/EUP exists on v6e / v7x only; keep the softmax path f32 on v5e & older.
    bf16_elementwise = ("v6" in kind) or ("v7" in kind) or ("7x" in kind)
    return vmem, (jnp.bfloat16 if bf16_elementwise else jnp.float32)


_VMEM_BYTES, _SOFTMAX_DTYPE = _tpu_config()


def _attn_kernel(x_ref, phit_ref, g_ref, wt_ref, wo_ref, gamma_ref, o_ref, *, softmax_dtype):
    # x_ref    : (1, TQ, C)      bf16  query tile of the flattened NHWC activations
    # phit_ref : (1, C/8, HW/4)  bf16  pooled phi features, pre-transposed (per-batch const)
    # g_ref    : (1, HW/4, C/2)  bf16  pooled g features (per-batch const)
    # wt_ref   : (C, C/8)        bf16  theta 1x1-conv weight
    # wo_ref   : (C/2, C)        bf16  output 1x1-conv weight
    # gamma_ref: (1,)            f32   in SMEM
    # o_ref    : (1, TQ, C)      bf16  output tile
    x_q = x_ref[0]                                                              # (TQ, C)

    theta = jnp.dot(x_q, wt_ref[...], preferred_element_type=jnp.float32)       # (TQ, C/8)

    # scores = theta @ phi^T as a plain NN matmul (phi arrives pre-transposed).
    s = jnp.dot(theta.astype(jnp.bfloat16), phit_ref[0],
                preferred_element_type=jnp.float32)                              # (TQ, HW/4)

    # Softmax with deferred normalization; elementwise path bf16 on v6e/v7x, f32 on v5e.
    s = s - jnp.max(s, axis=-1, keepdims=True)
    p = jnp.exp(s.astype(softmax_dtype))                                         # (TQ, HW/4)
    denom = jnp.sum(p.astype(jnp.float32), axis=-1, keepdims=True)               # (TQ, 1)

    attn = jnp.dot(p.astype(jnp.bfloat16), g_ref[0],
                   preferred_element_type=jnp.float32)                            # (TQ, C/2) un-normalized
    o = jnp.dot(attn.astype(jnp.bfloat16), wo_ref[...],
                preferred_element_type=jnp.float32)                               # (TQ, C)  un-normalized

    # Fold the softmax 1/denom with gamma (row scaling commutes with the wo matmul).
    scale = gamma_ref[0] * pl.reciprocal(denom, approx=True)                      # (TQ, 1)
    o_ref[0] = (scale * o + x_q.astype(jnp.float32)).astype(o_ref.dtype)


def _pick_query_tile(hw, hw4, vmem_bytes):
    """Largest MXU-friendly query tile dividing HW such that ~3 live (TQ, HW/4)
    softmax temporaries stay within a generation-aware VMEM budget."""
    budget = vmem_bytes // 12            # 64 MiB part -> ~5.3 MiB, 128 MiB -> ~10.6 MiB
    per_row = 3 * hw4 * 4                # count the temporaries as f32 (conservative)
    cap = max(8, budget // max(1, per_row))
    # Prefer multiples of 256 (MXU M tile on v6e/v7x), then smaller powers of two.
    for cand in (2048, 1024, 768, 512, 256, 128, 64, 32, 16, 8):
        if cand <= hw and cand <= cap and hw % cand == 0:
            return cand
    # Fallback: largest sublane-aligned divisor of HW under the cap; whole HW only if it
    # actually fits.  Never silently blow the VMEM budget.
    for cand in range(min(hw, cap), 7, -1):
        if hw % cand == 0 and cand % 8 == 0:
            return cand
    if hw <= cap:
        return hw
    raise ValueError(
        f"Self_Attn_Non_Local: no query tile for HW={hw} fits VMEM (cap={cap} rows); "
        f"pad H*W to a multiple of 8.")


@jax.jit
def self_attn_non_local(x_nchw, w_theta, w_phi, w_g, w_o, gamma):
    """x_nchw: (B, C, H, W). Conv weights in PyTorch (out, in, 1, 1) layout; gamma scalar."""
    B, C, H, W = x_nchw.shape
    assert H % 2 == 0 and W % 2 == 0 and C % 8 == 0
    HW, HW4, C8, C2 = H * W, (H // 2) * (W // 2), C // 8, C // 2

    # ---- layout glue: NCHW -> flattened NHWC bf16 --------------------------------------
    # TODO(synk): if the surrounding model keeps activations NHWC, drop this transpose
    # (and the inverse one on the output) entirely.
    x_nhwc = jnp.transpose(x_nchw, (0, 2, 3, 1)).astype(jnp.bfloat16)            # (B,H,W,C)
    x_flat = x_nhwc.reshape(B, HW, C)

    # Conv weights (out, in, 1, 1) -> (in, out) matmul weights; bf16 MXU operands.
    wt = jnp.transpose(w_theta[:, :, 0, 0]).astype(jnp.bfloat16)                  # (C, C/8)
    w_pg = jnp.concatenate(
        [jnp.transpose(w_phi[:, :, 0, 0]), jnp.transpose(w_g[:, :, 0, 0])],
        axis=1).astype(jnp.bfloat16)                                              # (C, C/8+C/2)
    wo = jnp.transpose(w_o[:, :, 0, 0]).astype(jnp.bfloat16)                      # (C/2, C)
    gamma_arr = jnp.asarray(gamma, jnp.float32).reshape(1)

    # ---- pooled [phi | g] pre-pass (hoisted out of the kernel) --------------------------
    # maxpool2d(conv1x1(x), [2,2]) == elementwise max of conv1x1 over each 2x2 window, so
    # the fused (C -> C/8 + C/2) projection + pool is one matmul and a reshape-max.
    proj = jnp.einsum("bhwc,cd->bhwd", x_nhwc, w_pg,
                      preferred_element_type=jnp.float32)                         # (B,H,W,.625C)
    pooled = proj.reshape(B, H // 2, 2, W // 2, 2, C8 + C2).max(axis=(2, 4))
    pooled = pooled.reshape(B, HW4, C8 + C2)
    phi_t = jnp.swapaxes(pooled[..., :C8], 1, 2).astype(jnp.bfloat16)             # (B, C/8, HW/4)
    g_mat = pooled[..., C8:].astype(jnp.bfloat16)                                 # (B, HW/4, C/2)

    tq = _pick_query_tile(HW, HW4, _VMEM_BYTES)
    num_q = HW // tq
    kernel = functools.partial(_attn_kernel, softmax_dtype=_SOFTMAX_DTYPE)
    vmem_limit = int(min(_VMEM_BYTES // 2, 64 * 1024 * 1024))

    out_flat = pl.pallas_call(
        kernel,
        out_shape=jax.ShapeDtypeStruct((B, HW, C), jnp.bfloat16),
        grid=(B, num_q),
        in_specs=[
            pl.BlockSpec((1, tq, C), lambda b, q: (b, q, 0)),        # x query tile
            pl.BlockSpec((1, C8, HW4), lambda b, q: (b, 0, 0)),      # phi^T (per-batch const)
            pl.BlockSpec((1, HW4, C2), lambda b, q: (b, 0, 0)),      # g     (per-batch const)
            pl.BlockSpec((C, C8), lambda b, q: (0, 0)),              # theta weight
            pl.BlockSpec((C2, C), lambda b, q: (0, 0)),              # output weight
            pl.BlockSpec(memory_space=pltpu.MemorySpace.SMEM),       # gamma
        ],
        out_specs=pl.BlockSpec((1, tq, C), lambda b, q: (b, q, 0)),
        compiler_params=pltpu.CompilerParams(
            dimension_semantics=("parallel", "parallel"),
            vmem_limit_bytes=vmem_limit,
        ),
    )(x_flat, phi_t, g_mat, wt, wo, gamma_arr)

    # ---- flattened NHWC (bf16) -> NCHW, back to the input dtype -------------------------
    out_nhwc = out_flat.reshape(B, H, W, C)
    return jnp.transpose(out_nhwc, (0, 3, 1, 2)).astype(x_nchw.dtype)


# ----------------------------- pure-JAX f32 reference -----------------------------------
def _ref_forward(x, w_theta, w_phi, w_g, w_o, gamma):
    B, C, H, W = x.shape
    C8, C2 = C // 8, C // 2

    def conv1x1(y, w):  # w: (out, in, 1, 1)
        return jnp.einsum("oc,bchw->bohw", w[:, :, 0, 0], y)

    def maxpool2x2(y):
        Bb, Cc, Hh, Ww = y.shape
        return y.reshape(Bb, Cc, Hh // 2, 2, Ww // 2, 2).max(axis=(3, 5))

    theta = conv1x1(x, w_theta).reshape(B, C8, H * W)
    phi = maxpool2x2(conv1x1(x, w_phi)).reshape(B, C8, H * W // 4)
    g = maxpool2x2(conv1x1(x, w_g)).reshape(B, C2, H * W // 4)
    beta = jax.nn.softmax(jnp.einsum("bcn,bcm->bnm", theta, phi), axis=-1)
    o_feat = jnp.einsum("bcm,bnm->bcn", g, beta).reshape(B, C2, H, W)
    o = conv1x1(o_feat, w_o)
    return gamma * o + x


def _spectral_normalize(w):
    """SNconv2d stand-in: divide the (out, in*k*k) weight matrix by its largest singular
    value (exact sigma instead of PyTorch's running power-iteration estimate)."""
    mat = w.reshape(w.shape[0], -1)
    sigma = jnp.linalg.svd(mat, compute_uv=False)[0]
    return w / sigma


if __name__ == "__main__":
    B, C, H, W = 2, 32, 16, 16            # C divisible by 8 (C//8 = 4, C//2 = 16)

    key = jax.random.PRNGKey(0)
    kx, k1, k2, k3, k4 = jax.random.split(key, 5)

    x = jax.random.normal(kx, (B, C, H, W), jnp.float32)

    # PyTorch-shaped conv weights (out, in, 1, 1), deterministic init + spectral norm.
    w_theta = _spectral_normalize(0.1 * jax.random.normal(k1, (C // 8, C, 1, 1), jnp.float32))
    w_phi = _spectral_normalize(0.1 * jax.random.normal(k2, (C // 8, C, 1, 1), jnp.float32))
    w_g = _spectral_normalize(0.1 * jax.random.normal(k3, (C // 2, C, 1, 1), jnp.float32))
    w_o = _spectral_normalize(0.1 * jax.random.normal(k4, (C, C // 2, 1, 1), jnp.float32))
    gamma = jnp.float32(0.0)              # nn.Parameter(torch.zeros()) -> scalar zero

    out = jax.block_until_ready(self_attn_non_local(x, w_theta, w_phi, w_g, w_o, gamma))
    ref = _ref_forward(x, w_theta, w_phi, w_g, w_o, gamma)
    assert out.shape == (B, C, H, W)
    assert out.dtype == x.dtype
    # bf16 MXU operands / bf16 output / approx reciprocal -> relaxed tolerance vs f32 ref.
    assert jnp.allclose(out, ref, atol=3e-2, rtol=3e-2), "mismatch vs JAX reference"

    # exercise the attention path with a non-zero gamma as well
    g7 = jnp.float32(0.7)
    out2 = jax.block_until_ready(self_attn_non_local(x, w_theta, w_phi, w_g, w_o, g7))
    ref2 = _ref_forward(x, w_theta, w_phi, w_g, w_o, g7)
    assert jnp.allclose(out2, ref2, atol=3e-2, rtol=3e-2), "mismatch vs JAX reference (gamma!=0)"

    print("KERNEL_OK")
</pallas_src>

<mosaic_0001>
module attributes {stable_mosaic.version = 11 : i64} {
  func.func @_attn_kernel(%arg0: i32, %arg1: i32, %arg2: memref<1x256x32xbf16, #tpu.memory_space<vmem>>, %arg3: memref<1x4x64xbf16, #tpu.memory_space<vmem>>, %arg4: memref<1x64x16xbf16, #tpu.memory_space<vmem>>, %arg5: memref<32x4xbf16, #tpu.memory_space<vmem>>, %arg6: memref<16x32xbf16, #tpu.memory_space<vmem>>, %arg7: memref<1xf32, #tpu.memory_space<smem>>, %arg8: memref<1x256x32xbf16, #tpu.memory_space<vmem>>) attributes {dimension_semantics = [#tpu.dimension_semantics<parallel>, #tpu.dimension_semantics<parallel>], iteration_bounds = array<i64: 2, 1>, scalar_prefetch = 0 : i64, scratch_operands = 0 : i64, tpu.core_type = #tpu.core_type<tc>, window_params = [{transform_indices = @transform_0, window_bounds = array<i64: 1, 256, 32>}, {transform_indices = @transform_1, window_bounds = array<i64: 1, 4, 64>}, {transform_indices = @transform_2, window_bounds = array<i64: 1, 64, 16>}, {pipeline_mode = #tpu.pipeline_mode<synchronous>, transform_indices = @transform_3, window_bounds = array<i64: 32, 4>}, {pipeline_mode = #tpu.pipeline_mode<synchronous>, transform_indices = @transform_4, window_bounds = array<i64: 16, 32>}, {transform_indices = @transform_5, window_bounds = array<i64: 1>}, {transform_indices = @transform_6, window_bounds = array<i64: 1, 256, 32>}]} {
    %c0 = arith.constant 0 : index
    %c0_0 = arith.constant 0 : index
    %c0_1 = arith.constant 0 : index
    %0 = vector.load %arg2[%c0, %c0_0, %c0_1] : memref<1x256x32xbf16, #tpu.memory_space<vmem>>, vector<1x256x32xbf16>
    %1 = vector.shape_cast %0 : vector<1x256x32xbf16> to vector<256x32xbf16>
    %c0_2 = arith.constant 0 : index
    %c0_3 = arith.constant 0 : index
    %2 = vector.load %arg5[%c0_2, %c0_3] : memref<32x4xbf16, #tpu.memory_space<vmem>>, vector<32x4xbf16>
    %cst = arith.constant dense<0.000000e+00> : vector<256x4xf32>
    %3 = tpu.matmul %1, %2, %cst {dimension_numbers = #tpu.dot_dimension_numbers<[1], [0], [0], [1], [0, 0, 1, 1], [], []>} : vector<256x32xbf16>, vector<32x4xbf16>, vector<256x4xf32> -> vector<256x4xf32>
    %4 = arith.truncf %3 : vector<256x4xf32> to vector<256x4xbf16>
    %c0_4 = arith.constant 0 : index
    %c0_5 = arith.constant 0 : index
    %c0_6 = arith.constant 0 : index
    %5 = vector.load %arg3[%c0_4, %c0_5, %c0_6] : memref<1x4x64xbf16, #tpu.memory_space<vmem>>, vector<1x4x64xbf16>
    %6 = vector.shape_cast %5 : vector<1x4x64xbf16> to vector<4x64xbf16>
    %cst_7 = arith.constant dense<0.000000e+00> : vector<256x64xf32>
    %7 = tpu.matmul %4, %6, %cst_7 {dimension_numbers = #tpu.dot_dimension_numbers<[1], [0], [0], [1], [0, 0, 1, 1], [], []>} : vector<256x4xbf16>, vector<4x64xbf16>, vector<256x64xf32> -> vector<256x64xf32>
    %cst_8 = arith.constant dense<0xFF800000> : vector<256xf32>
    %8 = vector.multi_reduction <maximumf>, %7, %cst_8 [1] : vector<256x64xf32> to vector<256xf32>
    %9 = vector.shape_cast %8 : vector<256xf32> to vector<256x1xf32>
    %10 = vector.broadcast %9 : vector<256x1xf32> to vector<256x64xf32>
    %11 = arith.subf %7, %10 : vector<256x64xf32>
    %12 = math.exp %11 : vector<256x64xf32>
    %cst_9 = arith.constant dense<0.000000e+00> : vector<256xf32>
    %13 = vector.multi_reduction <add>, %12, %cst_9 [1] : vector<256x64xf32> to vector<256xf32>
    %14 = vector.shape_cast %13 : vector<256xf32> to vector<256x1xf32>
    %15 = arith.truncf %12 : vector<256x64xf32> to vector<256x64xbf16>
    %c0_10 = arith.constant 0 : index
    %c0_11 = arith.constant 0 : index
    %c0_12 = arith.constant 0 : index
    %16 = vector.load %arg4[%c0_10, %c0_11, %c0_12] : memref<1x64x16xbf16, #tpu.memory_space<vmem>>, vector<1x64x16xbf16>
    %17 = vector.shape_cast %16 : vector<1x64x16xbf16> to vector<64x16xbf16>
    %cst_13 = arith.constant dense<0.000000e+00> : vector<256x16xf32>
    %18 = tpu.matmul %15, %17, %cst_13 {dimension_numbers = #tpu.dot_dimension_numbers<[1], [0], [0], [1], [0, 0, 1, 1], [], []>} : vector<256x64xbf16>, vector<64x16xbf16>, vector<256x16xf32> -> vector<256x16xf32>
    %19 = arith.truncf %18 : vector<256x16xf32> to vector<256x16xbf16>
    %c0_14 = arith.constant 0 : index
    %c0_15 = arith.constant 0 : index
    %20 = vector.load %arg6[%c0_14, %c0_15] : memref<16x32xbf16, #tpu.memory_space<vmem>>, vector<16x32xbf16>
    %cst_16 = arith.constant dense<0.000000e+00> : vector<256x32xf32>
    %21 = tpu.matmul %19, %20, %cst_16 {dimension_numbers = #tpu.dot_dimension_numbers<[1], [0], [0], [1], [0, 0, 1, 1], [], []>} : vector<256x16xbf16>, vector<16x32xbf16>, vector<256x32xf32> -> vector<256x32xf32>
    %c0_17 = arith.constant 0 : index
    %22 = memref.load %arg7[%c0_17] : memref<1xf32, #tpu.memory_space<smem>>
    %23 = tpu.reciprocal %14 {approx = true} : vector<256x1xf32> -> vector<256x1xf32>
    %24 = vector.broadcast %22 : f32 to vector<256x1xf32>
    %25 = arith.mulf %24, %23 : vector<256x1xf32>
    %26 = vector.broadcast %25 : vector<256x1xf32> to vector<256x32xf32>
    %27 = arith.mulf %26, %21 : vector<256x32xf32>
    %28 = arith.extf %1 : vector<256x32xbf16> to vector<256x32xf32>
    %29 = arith.addf %27, %28 : vector<256x32xf32>
    %30 = arith.truncf %29 : vector<256x32xf32> to vector<256x32xbf16>
    %c0_18 = arith.constant 0 : index
    %c0_19 = arith.constant 0 : index
    %c0_20 = arith.constant 0 : index
    %31 = vector.load %arg8[%c0_18, %c0_19, %c0_20] : memref<1x256x32xbf16, #tpu.memory_space<vmem>>, vector<1x256x32xbf16>
    %32 = vector.shape_cast %31 : vector<1x256x32xbf16> to vector<256x32xbf16>
    %33 = vector.shape_cast %30 : vector<256x32xbf16> to vector<1x256x32xbf16>
    tpu.vector_store %arg8[%c0_18, %c0_19, %c0_20], %33 {strides = array<i32>} : memref<1x256x32xbf16, #tpu.memory_space<vmem>>, vector<1x256x32xbf16>,
    return
  }
  func.func @transform_0(%arg0: i32, %arg1: i32) -> (i32, i32, i32) {
    %c0_i32 = arith.constant 0 : i32
    %c0_i32_0 = arith.constant 0 : i32
    return %arg0, %arg1, %c0_i32 : i32, i32, i32
  }
  func.func @transform_1(%arg0: i32, %arg1: i32) -> (i32, i32, i32) {
    %c0_i32 = arith.constant 0 : i32
    %c0_i32_0 = arith.constant 0 : i32
    %c0_i32_1 = arith.constant 0 : i32
    return %arg0, %c0_i32, %c0_i32_0 : i32, i32, i32
  }
  func.func @transform_2(%arg0: i32, %arg1: i32) -> (i32, i32, i32) {
    %c0_i32 = arith.constant 0 : i32
    %c0_i32_0 = arith.constant 0 : i32
    %c0_i32_1 = arith.constant 0 : i32
    return %arg0, %c0_i32, %c0_i32_0 : i32, i32, i32
  }
  func.func @transform_3(%arg0: i32, %arg1: i32) -> (i32, i32) {
    %c0_i32 = arith.constant 0 : i32
    %c0_i32_0 = arith.constant 0 : i32
    %c0_i32_1 = arith.constant 0 : i32
    return %c0_i32, %c0_i32_0 : i32, i32
  }
  func.func @transform_4(%arg0: i32, %arg1: i32) -> (i32, i32) {
    %c0_i32 = arith.constant 0 : i32
    %c0_i32_0 = arith.constant 0 : i32
    %c0_i32_1 = arith.constant 0 : i32
    return %c0_i32, %c0_i32_0 : i32, i32
  }
  func.func @transform_5(%arg0: i32, %arg1: i32) -> i32 {
    %c0_i32 = arith.constant 0 : i32
    %c0_i32_0 = arith.constant 0 : i32
    return %c0_i32 : i32
  }
  func.func @transform_6(%arg0: i32, %arg1: i32) -> (i32, i32, i32) {
    %c0_i32 = arith.constant 0 : i32
    %c0_i32_0 = arith.constant 0 : i32
    return %arg0, %arg1, %c0_i32 : i32, i32, i32
  }
}

</mosaic_0001>

<llo_original>
// kernel: self_attn_non_local.1
$region0: #{self_attn_non_local.1}
  #allocation0 [shape = 'u32[]', space=smem, size = 0x4, offset = 0x4, fixed_abs, tag = 'smem constant byte address 0x4 - core index']
  #allocation1 [shape = 'u32[144,128]{1,0:T(1,128)}', space=vmem, size = 0x12000, scoped, tag = 'internal scratch']
  #allocation2 [shape = 'f32[1]{0:T(128)S(6)}', space=smem, size = 0x200, scoped, tag = 'scoped memory for self_attn_non_local.1']
  %s0 = inlined_call_operand.vmem [shape: bf16[2,256,32], index: 0, kind: input, shape index: {}]
  %s1 = inlined_call_operand.vmem [shape: bf16[2,4,64], index: 1, kind: input, shape index: {}]
  %s2 = inlined_call_operand.vmem [shape: bf16[2,64,16], index: 2, kind: input, shape index: {}]
  %s3 = inlined_call_operand.vmem [shape: bf16[32,4], index: 3, kind: input, shape index: {}]
  %s4 = inlined_call_operand.vmem [shape: bf16[16,32], index: 4, kind: input, shape index: {}]
  %s5 = inlined_call_operand.<no memory space> [shape: f32[1], index: 5, kind: input, shape index: {}]
  %s6 = inlined_call_operand.vmem [shape: bf16[2,256,32], index: 6, kind: output, shape index: {}]
  %s7 = sld [smem:[#allocation0]]
  $region57: #{self_attn_non_local.1} parent=0
    _
  %s9 = ssub.s32 1, %s7
  %s10 = scalar_select 0, %s9, %s7
  %11 = sst [smem:[#allocation2]] %s5
  loop: start=0, step=1, limit=4
  $region2: #{self_attn_non_local.1} parent=0 // loop_pre_header
    _
  $region3: #{self_attn_non_local.1} parent=0 // loop_header
    %s13 = sphi 0, %s17
    %p14 = scmp.ge.s32.totalorder %s13, 4
    %s20 = sphi 0, %s32
    %s21 = sphi 0, %s28
    %s22 = sphi 0, %s20
    %s23 = sphi 0, %s21
    %s24 = sphi 0, %s22
    %s25 = sphi 0, %s23
    %s37 = sphi 0, %s39
    %s40 = sphi 0, %s37
    %s41 = sphi 0, %s40
    %s57 = sphi 0, %s41
    %s63 = sphi 0, %s65
    %s66 = sphi 0, %s63
    %s67 = sphi 0, %s66
    %s83 = sphi 0, %s67
    %s89 = sphi 0, %s91
    %s92 = sphi 0, %s89
    %s93 = sphi 0, %s92
    %s109 = sphi 0, %s93
    %s113 = sphi 0, %s113
    %s115 = sphi 0, %s113
    %s116 = sphi 0, %s115
    %s130 = sphi 0, %s116
    %s134 = sphi 0, %s134
    %s136 = sphi 0, %s134
    %s137 = sphi 0, %s136
    %s151 = sphi 0, %s137
    %s155 = sphi 0, %s155
    %s157 = sphi 0, %s155
    %s158 = sphi 0, %s157
    %s172 = sphi 0, %s158
    %s180 = sphi 0, %s182
    %s183 = sphi 0, %s180
    %s184 = sphi 0, %s183
    %s200 = sphi 0, %s184
  $region4: #{self_attn_non_local.1} parent=0 // loop_header_branch
    %16 = sbr.rel (%p14) target = $region8
  $region5: #{self_attn_non_local.1} parent=0 // loop_body
    %s18 = ssub.s32 %s13, 1
    %s19 = ssub.s32 %s13, 2
    %s26 = sadd.s32 1, %s21
    %p27 = scmp.ge.s32.totalorder %s26, 1
    %s28 = scalar_select %p27, 0, %s26
    %s29 = sadd.s32 1, %s20
    %s30 = scalar_select %p27, %s29, %s20
    %p31 = scmp.ge.s32.totalorder %s30, 2
    %s32 = scalar_select %p31, 0, %s30
    %s33 = ssub.s32 %s20, %s32
    %s34 = ssub.s32 %s21, %s28
    %s35 = sor.u32 %s33, %s34
    %p36 = scmp.eq.s32.totalorder %s35, 0
    %s38 = sadd.s32 %s37, 1
    %s39 = scalar_select %p36, %s37, %s38
    %p42 = pneg %p36
    %p43 = scmp.eq.s32.totalorder %s13, 1
    %p44 = por %p42, %p43
    %p45 = scmp.ne.s32.totalorder %s37, %s40
    %p46 = scmp.eq.s32.totalorder %s13, 0
    %p47 = por %p45, %p46
    %p48 = scmp.ne.s32.totalorder %s37, %s40
    %p49 = scmp.eq.s32.totalorder %s18, 1
    %p50 = por %p48, %p49
    %p51 = scmp.ne.s32.totalorder %s40, %s41
    %p52 = scmp.eq.s32.totalorder %s18, 0
    %p53 = por %p51, %p52
    %p54 = scmp.ne.s32.totalorder %s40, %s41
    %p55 = scmp.eq.s32.totalorder %s19, 1
    %p56 = por %p54, %p55
    %p58 = scmp.ne.s32.totalorder %s41, %s57
    %p59 = scmp.eq.s32.totalorder %s19, 0
    %p60 = por %p58, %p59
    %s61 = ssub.s32 %s20, %s32
    %p62 = scmp.eq.s32.totalorder %s61, 0
    %s64 = sadd.s32 %s63, 1
    %s65 = scalar_select %p62, %s63, %s64
    %p68 = pneg %p62
    %p69 = scmp.eq.s32.totalorder %s13, 1
    %p70 = por %p68, %p69
    %p71 = scmp.ne.s32.totalorder %s63, %s66
    %p72 = scmp.eq.s32.totalorder %s13, 0
    %p73 = por %p71, %p72
    %p74 = scmp.ne.s32.totalorder %s63, %s66
    %p75 = scmp.eq.s32.totalorder %s18, 1
    %p76 = por %p74, %p75
    %p77 = scmp.ne.s32.totalorder %s66, %s67
    %p78 = scmp.eq.s32.totalorder %s18, 0
    %p79 = por %p77, %p78
    %p80 = scmp.ne.s32.totalorder %s66, %s67
    %p81 = scmp.eq.s32.totalorder %s19, 1
    %p82 = por %p80, %p81
    %p84 = scmp.ne.s32.totalorder %s67, %s83
    %p85 = scmp.eq.s32.totalorder %s19, 0
    %p86 = por %p84, %p85
    %s87 = ssub.s32 %s20, %s32
    %p88 = scmp.eq.s32.totalorder %s87, 0
    %s90 = sadd.s32 %s89, 1
    %s91 = scalar_select %p88, %s89, %s90
    %p94 = pneg %p88
    %p95 = scmp.eq.s32.totalorder %s13, 1
    %p96 = por %p94, %p95
    %p97 = scmp.ne.s32.totalorder %s89, %s92
    %p98 = scmp.eq.s32.totalorder %s13, 0
    %p99 = por %p97, %p98
    %p100 = scmp.ne.s32.totalorder %s89, %s92
    %p101 = scmp.eq.s32.totalorder %s18, 1
    %p102 = por %p100, %p101
    %p103 = scmp.ne.s32.totalorder %s92, %s93
    %p104 = scmp.eq.s32.totalorder %s18, 0
    %p105 = por %p103, %p104
    %p106 = scmp.ne.s32.totalorder %s92, %s93
    %p107 = scmp.eq.s32.totalorder %s19, 1
    %p108 = por %p106, %p107
    %p110 = scmp.ne.s32.totalorder %s93, %s109
    %p111 = scmp.eq.s32.totalorder %s19, 0
    %p112 = por %p110, %p111
    %s114 = sadd.s32 %s113, 1
    %p117 = scmp.eq.s32.totalorder %s13, 1
    %p118 = scmp.ne.s32.totalorder %s113, %s115
    %p119 = scmp.eq.s32.totalorder %s13, 0
    %p120 = por %p118, %p119
    %p121 = scmp.ne.s32.totalorder %s113, %s115
    %p122 = scmp.eq.s32.totalorder %s18, 1
    %p123 = por %p121, %p122
    %p124 = scmp.ne.s32.totalorder %s115, %s116
    %p125 = scmp.eq.s32.totalorder %s18, 0
    %p126 = por %p124, %p125
    %p127 = scmp.ne.s32.totalorder %s115, %s116
    %p128 = scmp.eq.s32.totalorder %s19, 1
    %p129 = por %p127, %p128
    %p131 = scmp.ne.s32.totalorder %s116, %s130
    %p132 = scmp.eq.s32.totalorder %s19, 0
    %p133 = por %p131, %p132
    %s135 = sadd.s32 %s134, 1
    %p138 = scmp.eq.s32.totalorder %s13, 1
    %p139 = scmp.ne.s32.totalorder %s134, %s136
    %p140 = scmp.eq.s32.totalorder %s13, 0
    %p141 = por %p139, %p140
    %p142 = scmp.ne.s32.totalorder %s134, %s136
    %p143 = scmp.eq.s32.totalorder %s18, 1
    %p144 = por %p142, %p143
    %p145 = scmp.ne.s32.totalorder %s136, %s137
    %p146 = scmp.eq.s32.totalorder %s18, 0
    %p147 = por %p145, %p146
    %p148 = scmp.ne.s32.totalorder %s136, %s137
    %p149 = scmp.eq.s32.totalorder %s19, 1
    %p150 = por %p148, %p149
    %p152 = scmp.ne.s32.totalorder %s137, %s151
    %p153 = scmp.eq.s32.totalorder %s19, 0
    %p154 = por %p152, %p153
    %s156 = sadd.s32 %s155, 1
    %p159 = scmp.eq.s32.totalorder %s13, 1
    %p160 = scmp.ne.s32.totalorder %s155, %s157
    %p161 = scmp.eq.s32.totalorder %s13, 0
    %p162 = por %p160, %p161
    %p163 = scmp.ne.s32.totalorder %s155, %s157
    %p164 = scmp.eq.s32.totalorder %s18, 1
    %p165 = por %p163, %p164
    %p166 = scmp.ne.s32.totalorder %s157, %s158
    %p167 = scmp.eq.s32.totalorder %s18, 0
    %p168 = por %p166, %p167
    %p169 = scmp.ne.s32.totalorder %s157, %s158
    %p170 = scmp.eq.s32.totalorder %s19, 1
    %p171 = por %p169, %p170
    %p173 = scmp.ne.s32.totalorder %s158, %s172
    %p174 = scmp.eq.s32.totalorder %s19, 0
    %p175 = por %p173, %p174
    %s176 = ssub.s32 %s20, %s32
    %s177 = ssub.s32 %s21, %s28
    %s178 = sor.u32 %s176, %s177
    %p179 = scmp.eq.s32.totalorder %s178, 0
    %s181 = sadd.s32 %s180, 1
    %s182 = scalar_select %p179, %s180, %s181
    %p185 = pneg %p179
    %p186 = scmp.eq.s32.totalorder %s13, 1
    %p187 = por %p185, %p186
    %p188 = scmp.ne.s32.totalorder %s180, %s183
    %p189 = scmp.eq.s32.totalorder %s13, 0
    %p190 = por %p188, %p189
    %p191 = scmp.ne.s32.totalorder %s180, %s183
    %p192 = scmp.eq.s32.totalorder %s18, 1
    %p193 = por %p191, %p192
    %p194 = scmp.ne.s32.totalorder %s183, %s184
    %p195 = scmp.eq.s32.totalorder %s18, 0
    %p196 = por %p194, %p195
    %p197 = scmp.ne.s32.totalorder %s183, %s184
    %p198 = scmp.eq.s32.totalorder %s19, 1
    %p199 = por %p197, %p198
    %p201 = scmp.ne.s32.totalorder %s184, %s200
    %p202 = scmp.eq.s32.totalorder %s19, 0
    %p203 = por %p201, %p202
    %p204 = scmp.le.s32.totalorder 1, %s13
    %p205 = scmp.lt.s32.totalorder %s13, 3
    %p206 = pnand %p204, %p205
    %p207 = pneg %p206
    // Predicated region
    $region9: #{self_attn_non_local.1} parent=5 // pred_check
      _
    $region10: #{self_attn_non_local.1} parent=5 // pred_check_branch
      %209 = sbr.rel (%p206) target = $region12
    $region11: #{self_attn_non_local.1} parent=5 // pred_region
      %s210 = ssub.s32 %s13, 1
      // Predicated region
      $region13: #{self_attn_non_local.1} parent=11 // pred_check
        %p211 = pneg %p126
      $region14: #{self_attn_non_local.1} parent=11 // pred_check_branch
        %213 = sbr.rel (%p211) target = $region16
      $region15: #{self_attn_non_local.1} parent=11 // pred_region
        _
      $region16: #{self_attn_non_local.1} parent=11 // pred_fallthru
        _
      // Predicated region
      $region17: #{self_attn_non_local.1} parent=11 // pred_check
        %p214 = pneg %p147
      $region18: #{self_attn_non_local.1} parent=11 // pred_check_branch
        %216 = sbr.rel (%p214) target = $region20
      $region19: #{self_attn_non_local.1} parent=11 // pred_region
        _
      $region20: #{self_attn_non_local.1} parent=11 // pred_fallthru
        _
      // Predicated region
      $region21: #{self_attn_non_local.1} parent=11 // pred_check
        %p217 = pneg %p168
      $region22: #{self_attn_non_local.1} parent=11 // pred_check_branch
        %219 = sbr.rel (%p217) target = $region24
      $region23: #{self_attn_non_local.1} parent=11 // pred_region
        _
      $region24: #{self_attn_non_local.1} parent=11 // pred_fallthru
        _
    $region12: #{self_attn_non_local.1} parent=5 // pred_fallthru
      _
    %p220 = scmp.lt.s32.totalorder %s13, 2
    // Predicated region
    $region25: #{self_attn_non_local.1} parent=5 // pred_check
      %p221 = pneg %p220
    $region26: #{self_attn_non_local.1} parent=5 // pred_check_branch
      %223 = sbr.rel (%p221) target = $region28
    $region27: #{self_attn_non_local.1} parent=5 // pred_region
      // Predicated region
      $region29: #{self_attn_non_local.1} parent=27 // pred_check
        %p224 = pneg %p47
      $region30: #{self_attn_non_local.1} parent=27 // pred_check_branch
        %226 = sbr.rel (%p224) target = $region32
      $region31: #{self_attn_non_local.1} parent=27 // pred_region
        %s227 = smul.u32 32, %s21
        %p228 = scmp.lt.s32.totalorder %s20, 1
        %s229 = scalar_select %p228, %s20, 1
        %p230 = scmp.lt.s32.totalorder %s227, 31
        %s231 = scalar_select %p230, %s227, 31
        %s232 = smul.addr %s229, 32
        %s233 = sadd.s32 %s231, %s232
        %s234 = smul.addr %s233, 4
        %s235 = scalar_lea.vmem %s0, %s234
        %s236 = smul.u32 32, %s21
      $region32: #{self_attn_non_local.1} parent=27 // pred_fallthru
        _
      // Predicated region
      $region33: #{self_attn_non_local.1} parent=27 // pred_check
        %p237 = pneg %p73
      $region34: #{self_attn_non_local.1} parent=27 // pred_check_branch
        %239 = sbr.rel (%p237) target = $region36
      $region35: #{self_attn_non_local.1} parent=27 // pred_region
        %p240 = scmp.lt.s32.totalorder %s20, 1
        %s241 = scalar_select %p240, %s20, 1
        %s242 = smul.addr %s241, 2
        %s243 = scalar_lea.vmem %s1, %s242
      $region36: #{self_attn_non_local.1} parent=27 // pred_fallthru
        _
      // Predicated region
      $region37: #{self_attn_non_local.1} parent=27 // pred_check
        %p244 = pneg %p99
      $region38: #{self_attn_non_local.1} parent=27 // pred_check_branch
        %246 = sbr.rel (%p244) target = $region40
      $region39: #{self_attn_non_local.1} parent=27 // pred_region
        %p247 = scmp.lt.s32.totalorder %s20, 1
        %s248 = scalar_select %p247, %s20, 1
        %s249 = smul.addr %s248, 8
        %s250 = smul.addr %s249, 4
        %s251 = scalar_lea.vmem %s2, %s250
      $region40: #{self_attn_non_local.1} parent=27 // pred_fallthru
        _
    $region28: #{self_attn_non_local.1} parent=5 // pred_fallthru
      _
    %p252 = scmp.le.s32.totalorder 1, %s13
    %p253 = scmp.lt.s32.totalorder %s13, 3
    %p254 = pnand %p252, %p253
    %p255 = pneg %p254
    // Predicated region
    $region41: #{self_attn_non_local.1} parent=5 // pred_check
      _
    $region42: #{self_attn_non_local.1} parent=5 // pred_check_branch
      %257 = sbr.rel (%p254) target = $region44
    $region43: #{self_attn_non_local.1} parent=5 // pred_region
      %s258 = ssub.s32 %s13, 1
      %s259 = smul.u32 32, %s23
      %p260 = scmp.lt.s32.totalorder %s22, 1
      %s261 = scalar_select %p260, %s22, 1
      %p262 = scmp.lt.s32.totalorder %s259, 31
      %s263 = scalar_select %p262, %s259, 31
      %s264 = smul.addr %s261, 32
      %s265 = sadd.s32 %s263, %s264
      %s266 = smul.addr %s265, 4
      %s267 = scalar_lea.vmem %s0, %s266
      %p268 = pneg %p53
      %p269 = pneg %p50
      %p270 = scmp.lt.s32.totalorder %s22, 1
      %s271 = scalar_select %p270, %s22, 1
      %s272 = smul.addr %s271, 2
      %s273 = scalar_lea.vmem %s1, %s272
      %p274 = pneg %p79
      %p275 = pneg %p76
      %p276 = scmp.lt.s32.totalorder %s22, 1
      %s277 = scalar_select %p276, %s22, 1
      %s278 = smul.addr %s277, 8
      %s279 = smul.addr %s278, 4
      %s280 = scalar_lea.vmem %s2, %s279
      %p281 = pneg %p105
      %p282 = pneg %p102
      %p283 = pneg %p126
      %p284 = pneg %p123
      %p285 = pneg %p147
      %p286 = pneg %p144
      %p287 = pneg %p168
      %p288 = pneg %p165
      %p289 = pneg %p196
      %p290 = pneg %p193
      %s291 = smul.u32 32, %s23
      %p292 = scmp.lt.s32.totalorder %s22, 1
      %s293 = scalar_select %p292, %s22, 1
      %p294 = scmp.lt.s32.totalorder %s291, 31
      %s295 = scalar_select %p294, %s291, 31
      %s296 = smul.addr %s293, 32
      %s297 = sadd.s32 %s295, %s296
      %s298 = smul.addr %s297, 4
      %s299 = scalar_lea.vmem %s6, %s298
      %s300 = smul.u32 32, %s23
      %p301 = scmp.lt.s32.totalorder %s22, 1
      %s302 = scalar_select %p301, %s22, 1
      %p303 = scmp.lt.s32.totalorder %s300, 31
      %s304 = scalar_select %p303, %s300, 31
      %s305 = smul.addr %s302, 32
      %s306 = sadd.s32 %s304, %s305
      %s307 = smul.addr %s306, 4
      %s308 = scalar_lea.vmem %s0, %s307
      %s309 = smul.u32 32, %s23
      %p310 = scmp.lt.s32.totalorder %s22, 1
      %s311 = scalar_select %p310, %s22, 1
      %s312 = smul.addr %s311, 2
      %s313 = scalar_lea.vmem %s1, %s312
      %p314 = scmp.lt.s32.totalorder %s22, 1
      %s315 = scalar_select %p314, %s22, 1
      %s316 = smul.addr %s315, 8
      %s317 = smul.addr %s316, 4
      %s318 = scalar_lea.vmem %s2, %s317
      %s319 = smul.u32 32, %s23
      %p320 = scmp.lt.s32.totalorder %s22, 1
      %s321 = scalar_select %p320, %s22, 1
      %p322 = scmp.lt.s32.totalorder %s319, 31
      %s323 = scalar_select %p322, %s319, 31
      %s324 = smul.addr %s321, 32
      %s325 = sadd.s32 %s323, %s324
      %s326 = smul.addr %s325, 4
      %s327 = scalar_lea.vmem %s6, %s326
      %s328 = smul.u32 32, %s23
      %v330 = vld [vmem:[%s308] sm:$0xf]
      %v331 = vld [vmem:[%s308 + $0x4] sm:$0xf]
      %v332 = vld [vmem:[%s308 + $0x8] sm:$0xf]
      %v333 = vld [vmem:[%s308 + $0xc] sm:$0xf]
      %v334 = vld [vmem:[%s308 + $0x10] sm:$0xf]
      %v335 = vld [vmem:[%s308 + $0x14] sm:$0xf]
      %v336 = vld [vmem:[%s308 + $0x18] sm:$0xf]
      %v337 = vld [vmem:[%s308 + $0x1c] sm:$0xf]
      %v338 = vld [vmem:[%s308 + $0x20] sm:$0xf]
      %v339 = vld [vmem:[%s308 + $0x24] sm:$0xf]
      %v340 = vld [vmem:[%s308 + $0x28] sm:$0xf]
      %v341 = vld [vmem:[%s308 + $0x2c] sm:$0xf]
      %v342 = vld [vmem:[%s308 + $0x30] sm:$0xf]
      %v343 = vld [vmem:[%s308 + $0x34] sm:$0xf]
      %v344 = vld [vmem:[%s308 + $0x38] sm:$0xf]
      %v345 = vld [vmem:[%s308 + $0x3c] sm:$0xf]
      %v346 = vld [vmem:[%s308 + $0x40] sm:$0xf]
      %v347 = vld [vmem:[%s308 + $0x44] sm:$0xf]
      %v348 = vld [vmem:[%s308 + $0x48] sm:$0xf]
      %v349 = vld [vmem:[%s308 + $0x4c] sm:$0xf]
      %v350 = vld [vmem:[%s308 + $0x50] sm:$0xf]
      %v351 = vld [vmem:[%s308 + $0x54] sm:$0xf]
      %v352 = vld [vmem:[%s308 + $0x58] sm:$0xf]
      %v353 = vld [vmem:[%s308 + $0x5c] sm:$0xf]
      %v354 = vld [vmem:[%s308 + $0x60] sm:$0xf]
      %v355 = vld [vmem:[%s308 + $0x64] sm:$0xf]
      %v356 = vld [vmem:[%s308 + $0x68] sm:$0xf]
      %v357 = vld [vmem:[%s308 + $0x6c] sm:$0xf]
      %v358 = vld [vmem:[%s308 + $0x70] sm:$0xf]
      %v359 = vld [vmem:[%s308 + $0x74] sm:$0xf]
      %v360 = vld [vmem:[%s308 + $0x78] sm:$0xf]
      %v361 = vld [vmem:[%s308 + $0x7c] sm:$0xf]
      %v362 = vld [vmem:[%s3] sm:$0xf]
      %v363 = vld [vmem:[%s3 + $0x4] sm:$0xf]
      %v364 = vld [vmem:[%s3 + $0x8] sm:$0xf]
      %v365 = vld [vmem:[%s3 + $0xc] sm:$0xf]
      %v398 = vunpack.c.l.b16 %v330
      %v399 = vunpack.c.l.b16 %v331
      %v400 = vunpack.c.l.b16 %v332
      %v401 = vunpack.c.l.b16 %v333
      %v402 = vunpack.c.l.b16 %v334
      %v403 = vunpack.c.l.b16 %v335
      %v404 = vunpack.c.l.b16 %v336
      %v405 = vunpack.c.l.b16 %v337
      %v406 = vunpack.c.l.b16 %v338
      %v407 = vunpack.c.l.b16 %v339
      %v408 = vunpack.c.l.b16 %v340
      %v409 = vunpack.c.l.b16 %v341
      %v410 = vunpack.c.l.b16 %v342
      %v411 = vunpack.c.l.b16 %v343
      %v412 = vunpack.c.l.b16 %v344
      %v413 = vunpack.c.l.b16 %v345
      %v414 = vunpack.c.l.b16 %v346
      %v415 = vunpack.c.l.b16 %v347
      %v416 = vunpack.c.l.b16 %v348
      %v417 = vunpack.c.l.b16 %v349
      %v418 = vunpack.c.l.b16 %v350
      %v419 = vunpack.c.l.b16 %v351
      %v420 = vunpack.c.l.b16 %v352
      %v421 = vunpack.c.l.b16 %v353
      %v422 = vunpack.c.l.b16 %v354
      %v423 = vunpack.c.l.b16 %v355
      %v424 = vunpack.c.l.b16 %v356
      %v425 = vunpack.c.l.b16 %v357
      %v426 = vunpack.c.l.b16 %v358
      %v427 = vunpack.c.l.b16 %v359
      %v428 = vunpack.c.l.b16 %v360
      %v429 = vunpack.c.l.b16 %v361
      %v430 = vpack.c.b16 %v399, %v398
      %v431 = vpack.c.b16 %v401, %v400
      %v432 = vpack.c.b16 %v403, %v402
      %v433 = vpack.c.b16 %v405, %v404
      %v434 = vpack.c.b16 %v407, %v406
      %v435 = vpack.c.b16 %v409, %v408
      %v436 = vpack.c.b16 %v411, %v410
      %v437 = vpack.c.b16 %v413, %v412
      %v438 = vpack.c.b16 %v415, %v414
      %v439 = vpack.c.b16 %v417, %v416
      %v440 = vpack.c.b16 %v419, %v418
      %v441 = vpack.c.b16 %v421, %v420
      %v442 = vpack.c.b16 %v423, %v422
      %v443 = vpack.c.b16 %v425, %v424
      %v444 = vpack.c.b16 %v427, %v426
      %v445 = vpack.c.b16 %v429, %v428
      %v450 = vunpack.c.l.b16 %v362
      %v451 = vunpack.c.l.b16 %v363
      %v452 = vunpack.c.l.b16 %v364
      %v453 = vunpack.c.l.b16 %v365
      %v454 = vpack.c.b16 %v451, %v450
      %v455 = vpack.c.b16 %v453, %v452
      %vm458 = vcmask 261120
      %v460 = vsel %vm458, %v430, 0
      %v463 = vsel %vm458, %v431, 0
      %v466 = vsel %vm458, %v432, 0
      %v469 = vsel %vm458, %v433, 0
      %v472 = vsel %vm458, %v434, 0
      %v475 = vsel %vm458, %v435, 0
      %v478 = vsel %vm458, %v436, 0
      %v481 = vsel %vm458, %v437, 0
      %v484 = vsel %vm458, %v438, 0
      %v487 = vsel %vm458, %v439, 0
      %v490 = vsel %vm458, %v440, 0
      %v493 = vsel %vm458, %v441, 0
      %v496 = vsel %vm458, %v442, 0
      %v499 = vsel %vm458, %v443, 0
      %v502 = vsel %vm458, %v444, 0
      %v505 = vsel %vm458, %v445, 0
      %507 = vmatprep.subr.bf16.mxu0 0
      %508 = vmatpush1.bf16.msra.mxu0 0
      %509 = vmatprep.subr.bf16.mxu0 0
      %510 = vmatpush1.bf16.msra.mxu0 0
      %511 = vmatprep.subr.bf16.mxu0 0
      %512 = vmatpush1.bf16.msra.mxu0 0
      %513 = vmatprep.subr.bf16.mxu0 0
      %514 = vmatpush1.bf16.msra.mxu0 0
      %515 = vmatprep.subr.bf16.mxu0 0
      %516 = vmatpush1.bf16.msra.mxu0 0
      %517 = vmatprep.subr.bf16.mxu0 0
      %518 = vmatpush1.bf16.msra.mxu0 0
      %519 = vmatprep.subr.bf16.mxu0 0
      %520 = vmatpush1.bf16.msra.mxu0 %v455
      %521 = vmatprep.subr.bf16.mxu0 0
      %522 = vmatpush1.bf16.msra.mxu0 %v454
      %523 = vmatprep.subr.bf16.mxu0 0
      %524 = vmatpush2.bf16.msra.mxu0 0
      %525 = vmatprep.subr.bf16.mxu0 0
      %526 = vmatpush2.bf16.msra.mxu0 0
      %527 = vmatprep.subr.bf16.mxu0 0
      %528 = vmatpush2.bf16.msra.mxu0 0
      %529 = vmatprep.subr.bf16.mxu0 0
      %530 = vmatpush2.bf16.msra.mxu0 0
      %531 = vmatprep.subr.bf16.mxu0 0
      %532 = vmatpush2.bf16.msra.mxu0 0
      %533 = vmatprep.subr.bf16.mxu0 0
      %534 = vmatpush2.bf16.msra.mxu0 0
      %535 = vmatprep.subr.bf16.mxu0 0
      %536 = vmatpush2.bf16.msra.mxu0 0
      %537 = vmatprep.subr.bf16.mxu0 0
      %538 = vmatpush2.bf16.msra.mxu0 0
      %539 = vmatprep.mubr.bf16.mxu0 0
      %540 = vmatmul.mubr.bf16.gmra.mxu0 %v460
      %v541 = vpop.f32.mrf.mxu0
      %v542 = vadd.f32 0.0, %v541
      %v543 = vpop.f32.mrf.mxu0
      %v544 = vpop.f32.mrf.mxu0
      %v545 = vadd.f32 0.0, %v544
      %v546 = vpop.f32.mrf.mxu0
      %547 = vmatprep.mubr.bf16.mxu0 0
      %548 = vmatmul.mubr.bf16.gmra.mxu0 %v463
      %v549 = vpop.f32.mrf.mxu0
      %v550 = vadd.f32 0.0, %v549
      %v551 = vpop.f32.mrf.mxu0
      %v552 = vpop.f32.mrf.mxu0
      %v553 = vadd.f32 0.0, %v552
      %v554 = vpop.f32.mrf.mxu0
      %555 = vmatprep.mubr.bf16.mxu0 0
      %556 = vmatmul.mubr.bf16.gmra.mxu0 %v466
      %v557 = vpop.f32.mrf.mxu0
      %v558 = vadd.f32 0.0, %v557
      %v559 = vpop.f32.mrf.mxu0
      %v560 = vpop.f32.mrf.mxu0
      %v561 = vadd.f32 0.0, %v560
      %v562 = vpop.f32.mrf.mxu0
      %563 = vmatprep.mubr.bf16.mxu0 0
      %564 = vmatmul.mubr.bf16.gmra.mxu0 %v469
      %v565 = vpop.f32.mrf.mxu0
      %v566 = vadd.f32 0.0, %v565
      %v567 = vpop.f32.mrf.mxu0
      %v568 = vpop.f32.mrf.mxu0
      %v569 = vadd.f32 0.0, %v568
      %v570 = vpop.f32.mrf.mxu0
      %571 = vmatprep.mubr.bf16.mxu0 0
      %572 = vmatmul.mubr.bf16.gmra.mxu0 %v472
      %v573 = vpop.f32.mrf.mxu0
      %v574 = vadd.f32 0.0, %v573
      %v575 = vpop.f32.mrf.mxu0
      %v576 = vpop.f32.mrf.mxu0
      %v577 = vadd.f32 0.0, %v576
      %v578 = vpop.f32.mrf.mxu0
      %579 = vmatprep.mubr.bf16.mxu0 0
      %580 = vmatmul.mubr.bf16.gmra.mxu0 %v475
      %v581 = vpop.f32.mrf.mxu0
      %v582 = vadd.f32 0.0, %v581
      %v583 = vpop.f32.mrf.mxu0
      %v584 = vpop.f32.mrf.mxu0
      %v585 = vadd.f32 0.0, %v584
      %v586 = vpop.f32.mrf.mxu0
      %587 = vmatprep.mubr.bf16.mxu0 0
      %588 = vmatmul.mubr.bf16.gmra.mxu0 %v478
      %v589 = vpop.f32.mrf.mxu0
      %v590 = vadd.f32 0.0, %v589
      %v591 = vpop.f32.mrf.mxu0
      %v592 = vpop.f32.mrf.mxu0
      %v593 = vadd.f32 0.0, %v592
      %v594 = vpop.f32.mrf.mxu0
      %595 = vmatprep.mubr.bf16.mxu0 0
      %596 = vmatmul.mubr.bf16.gmra.mxu0 %v481
      %v597 = vpop.f32.mrf.mxu0
      %v598 = vadd.f32 0.0, %v597
      %v599 = vpop.f32.mrf.mxu0
      %v600 = vpop.f32.mrf.mxu0
      %v601 = vadd.f32 0.0, %v600
      %v602 = vpop.f32.mrf.mxu0
      %603 = vmatprep.mubr.bf16.mxu0 0
      %604 = vmatmul.mubr.bf16.gmra.mxu0 %v484
      %v605 = vpop.f32.mrf.mxu0
      %v606 = vadd.f32 0.0, %v605
      %v607 = vpop.f32.mrf.mxu0
      %v608 = vpop.f32.mrf.mxu0
      %v609 = vadd.f32 0.0, %v608
      %v610 = vpop.f32.mrf.mxu0
      %611 = vmatprep.mubr.bf16.mxu0 0
      %612 = vmatmul.mubr.bf16.gmra.mxu0 %v487
      %v613 = vpop.f32.mrf.mxu0
      %v614 = vadd.f32 0.0, %v613
      %v615 = vpop.f32.mrf.mxu0
      %v616 = vpop.f32.mrf.mxu0
      %v617 = vadd.f32 0.0, %v616
      %v618 = vpop.f32.mrf.mxu0
      %619 = vmatprep.mubr.bf16.mxu0 0
      %620 = vmatmul.mubr.bf16.gmra.mxu0 %v490
      %v621 = vpop.f32.mrf.mxu0
      %v622 = vadd.f32 0.0, %v621
      %v623 = vpop.f32.mrf.mxu0
      %v624 = vpop.f32.mrf.mxu0
      %v625 = vadd.f32 0.0, %v624
      %v626 = vpop.f32.mrf.mxu0
      %627 = vmatprep.mubr.bf16.mxu0 0
      %628 = vmatmul.mubr.bf16.gmra.mxu0 %v493
      %v629 = vpop.f32.mrf.mxu0
      %v630 = vadd.f32 0.0, %v629
      %v631 = vpop.f32.mrf.mxu0
      %v632 = vpop.f32.mrf.mxu0
      %v633 = vadd.f32 0.0, %v632
      %v634 = vpop.f32.mrf.mxu0
      %635 = vmatprep.mubr.bf16.mxu0 0
      %636 = vmatmul.mubr.bf16.gmra.mxu0 %v496
      %v637 = vpop.f32.mrf.mxu0
      %v638 = vadd.f32 0.0, %v637
      %v639 = vpop.f32.mrf.mxu0
      %v640 = vpop.f32.mrf.mxu0
      %v641 = vadd.f32 0.0, %v640
      %v642 = vpop.f32.mrf.mxu0
      %643 = vmatprep.mubr.bf16.mxu0 0
      %644 = vmatmul.mubr.bf16.gmra.mxu0 %v499
      %v645 = vpop.f32.mrf.mxu0
      %v646 = vadd.f32 0.0, %v645
      %v647 = vpop.f32.mrf.mxu0
      %v648 = vpop.f32.mrf.mxu0
      %v649 = vadd.f32 0.0, %v648
      %v650 = vpop.f32.mrf.mxu0
      %651 = vmatprep.mubr.bf16.mxu0 0
      %652 = vmatmul.mubr.bf16.gmra.mxu0 %v502
      %v653 = vpop.f32.mrf.mxu0
      %v654 = vadd.f32 0.0, %v653
      %v655 = vpop.f32.mrf.mxu0
      %v656 = vpop.f32.mrf.mxu0
      %v657 = vadd.f32 0.0, %v656
      %v658 = vpop.f32.mrf.mxu0
      %659 = vmatprep.mubr.bf16.mxu0 0
      %660 = vmatmul.mubr.bf16.gmra.mxu0 %v505
      %v661 = vpop.f32.mrf.mxu0
      %v662 = vadd.f32 0.0, %v661
      %v663 = vpop.f32.mrf.mxu0
      %v664 = vpop.f32.mrf.mxu0
      %v665 = vadd.f32 0.0, %v664
      %v666 = vpop.f32.mrf.mxu0
      %667 = vdwg.mxu0
      %v668 = vpack.c.bf16 %v545, %v542
      %v669 = vpack.c.bf16 %v553, %v550
      %v670 = vpack.c.bf16 %v561, %v558
      %v671 = vpack.c.bf16 %v569, %v566
      %v672 = vpack.c.bf16 %v577, %v574
      %v673 = vpack.c.bf16 %v585, %v582
      %v674 = vpack.c.bf16 %v593, %v590
      %v675 = vpack.c.bf16 %v601, %v598
      %v676 = vpack.c.bf16 %v609, %v606
      %v677 = vpack.c.bf16 %v617, %v614
      %v678 = vpack.c.bf16 %v625, %v622
      %v679 = vpack.c.bf16 %v633, %v630
      %v680 = vpack.c.bf16 %v641, %v638
      %v681 = vpack.c.bf16 %v649, %v646
      %v682 = vpack.c.bf16 %v657, %v654
      %v683 = vpack.c.bf16 %v665, %v662
      %v684 = vld [vmem:[%s313] sm:$0x3]
      %vm685 = vcmask 31744
      %v687 = vsel %vm685, %v668, 0
      %v690 = vsel %vm685, %v669, 0
      %v693 = vsel %vm685, %v670, 0
      %v696 = vsel %vm685, %v671, 0
      %v699 = vsel %vm685, %v672, 0
      %v702 = vsel %vm685, %v673, 0
      %v705 = vsel %vm685, %v674, 0
      %v708 = vsel %vm685, %v675, 0
      %v711 = vsel %vm685, %v676, 0
      %v714 = vsel %vm685, %v677, 0
      %v717 = vsel %vm685, %v678, 0
      %v720 = vsel %vm685, %v679, 0
      %v723 = vsel %vm685, %v680, 0
      %v726 = vsel %vm685, %v681, 0
      %v729 = vsel %vm685, %v682, 0
      %v732 = vsel %vm685, %v683, 0
      %vm734 = vcmask 1041408
      %v736 = vsel %vm734, %v684, 0
      %738 = vmatprep.subr.bf16.mxu0 0
      %739 = vmatpush1.bf16.msra.mxu0 0
      %740 = vmatprep.subr.bf16.mxu0 0
      %741 = vmatpush1.bf16.msra.mxu0 0
      %742 = vmatprep.subr.bf16.mxu0 0
      %743 = vmatpush1.bf16.msra.mxu0 0
      %744 = vmatprep.subr.bf16.mxu0 0
      %745 = vmatpush1.bf16.msra.mxu0 0
      %746 = vmatprep.subr.bf16.mxu0 0
      %747 = vmatpush1.bf16.msra.mxu0 0
      %748 = vmatprep.subr.bf16.mxu0 0
      %749 = vmatpush1.bf16.msra.mxu0 0
      %750 = vmatprep.subr.bf16.mxu0 0
      %751 = vmatpush1.bf16.msra.mxu0 0
      %752 = vmatprep.subr.bf16.mxu0 0
      %753 = vmatpush1.bf16.msra.mxu0 %v736
      %754 = vmatprep.subr.bf16.mxu0 0
      %755 = vmatpush2.bf16.msra.mxu0 0
      %756 = vmatprep.subr.bf16.mxu0 0
      %757 = vmatpush2.bf16.msra.mxu0 0
      %758 = vmatprep.subr.bf16.mxu0 0
      %759 = vmatpush2.bf16.msra.mxu0 0
      %760 = vmatprep.subr.bf16.mxu0 0
      %761 = vmatpush2.bf16.msra.mxu0 0
      %762 = vmatprep.subr.bf16.mxu0 0
      %763 = vmatpush2.bf16.msra.mxu0 0
      %764 = vmatprep.subr.bf16.mxu0 0
      %765 = vmatpush2.bf16.msra.mxu0 0
      %766 = vmatprep.subr.bf16.mxu0 0
      %767 = vmatpush2.bf16.msra.mxu0 0
      %768 = vmatprep.subr.bf16.mxu0 0
      %769 = vmatpush2.bf16.msra.mxu0 0
      %770 = vmatprep.mubr.bf16.mxu0 0
      %771 = vmatmul.mubr.bf16.gmra.mxu0 %v687
      %v772 = vpop.f32.mrf.mxu0
      %v773 = vadd.f32 0.0, %v772
      %v774 = vpop.f32.mrf.mxu0
      %v775 = vpop.f32.mrf.mxu0
      %v776 = vadd.f32 0.0, %v775
      %v777 = vpop.f32.mrf.mxu0
      %778 = vmatprep.mubr.bf16.mxu0 0
      %779 = vmatmul.mubr.bf16.gmra.mxu0 %v690
      %v780 = vpop.f32.mrf.mxu0
      %v781 = vadd.f32 0.0, %v780
      %v782 = vpop.f32.mrf.mxu0
      %v783 = vpop.f32.mrf.mxu0
      %v784 = vadd.f32 0.0, %v783
      %v785 = vpop.f32.mrf.mxu0
      %786 = vmatprep.mubr.bf16.mxu0 0
      %787 = vmatmul.mubr.bf16.gmra.mxu0 %v693
      %v788 = vpop.f32.mrf.mxu0
      %v789 = vadd.f32 0.0, %v788
      %v790 = vpop.f32.mrf.mxu0
      %v791 = vpop.f32.mrf.mxu0
      %v792 = vadd.f32 0.0, %v791
      %v793 = vpop.f32.mrf.mxu0
      %794 = vmatprep.mubr.bf16.mxu0 0
      %795 = vmatmul.mubr.bf16.gmra.mxu0 %v696
      %v796 = vpop.f32.mrf.mxu0
      %v797 = vadd.f32 0.0, %v796
      %v798 = vpop.f32.mrf.mxu0
      %v799 = vpop.f32.mrf.mxu0
      %v800 = vadd.f32 0.0, %v799
      %v801 = vpop.f32.mrf.mxu0
      %802 = vmatprep.mubr.bf16.mxu0 0
      %803 = vmatmul.mubr.bf16.gmra.mxu0 %v699
      %v804 = vpop.f32.mrf.mxu0
      %v805 = vadd.f32 0.0, %v804
      %v806 = vpop.f32.mrf.mxu0
      %v807 = vpop.f32.mrf.mxu0
      %v808 = vadd.f32 0.0, %v807
      %v809 = vpop.f32.mrf.mxu0
      %810 = vmatprep.mubr.bf16.mxu0 0
      %811 = vmatmul.mubr.bf16.gmra.mxu0 %v702
      %v812 = vpop.f32.mrf.mxu0
      %v813 = vadd.f32 0.0, %v812
      %v814 = vpop.f32.mrf.mxu0
      %v815 = vpop.f32.mrf.mxu0
      %v816 = vadd.f32 0.0, %v815
      %v817 = vpop.f32.mrf.mxu0
      %818 = vmatprep.mubr.bf16.mxu0 0
      %819 = vmatmul.mubr.bf16.gmra.mxu0 %v705
      %v820 = vpop.f32.mrf.mxu0
      %v821 = vadd.f32 0.0, %v820
      %v822 = vpop.f32.mrf.mxu0
      %v823 = vpop.f32.mrf.mxu0
      %v824 = vadd.f32 0.0, %v823
      %v825 = vpop.f32.mrf.mxu0
      %826 = vmatprep.mubr.bf16.mxu0 0
      %827 = vmatmul.mubr.bf16.gmra.mxu0 %v708
      %v828 = vpop.f32.mrf.mxu0
      %v829 = vadd.f32 0.0, %v828
      %v830 = vpop.f32.mrf.mxu0
      %v831 = vpop.f32.mrf.mxu0
      %v832 = vadd.f32 0.0, %v831
      %v833 = vpop.f32.mrf.mxu0
      %834 = vmatprep.mubr.bf16.mxu0 0
      %835 = vmatmul.mubr.bf16.gmra.mxu0 %v711
      %v836 = vpop.f32.mrf.mxu0
      %v837 = vadd.f32 0.0, %v836
      %v838 = vpop.f32.mrf.mxu0
      %v839 = vpop.f32.mrf.mxu0
      %v840 = vadd.f32 0.0, %v839
      %v841 = vpop.f32.mrf.mxu0
      %842 = vmatprep.mubr.bf16.mxu0 0
      %843 = vmatmul.mubr.bf16.gmra.mxu0 %v714
      %v844 = vpop.f32.mrf.mxu0
      %v845 = vadd.f32 0.0, %v844
      %v846 = vpop.f32.mrf.mxu0
      %v847 = vpop.f32.mrf.mxu0
      %v848 = vadd.f32 0.0, %v847
      %v849 = vpop.f32.mrf.mxu0
      %850 = vmatprep.mubr.bf16.mxu0 0
      %851 = vmatmul.mubr.bf16.gmra.mxu0 %v717
      %v852 = vpop.f32.mrf.mxu0
      %v853 = vadd.f32 0.0, %v852
      %v854 = vpop.f32.mrf.mxu0
      %v855 = vpop.f32.mrf.mxu0
      %v856 = vadd.f32 0.0, %v855
      %v857 = vpop.f32.mrf.mxu0
      %858 = vmatprep.mubr.bf16.mxu0 0
      %859 = vmatmul.mubr.bf16.gmra.mxu0 %v720
      %v860 = vpop.f32.mrf.mxu0
      %v861 = vadd.f32 0.0, %v860
      %v862 = vpop.f32.mrf.mxu0
      %v863 = vpop.f32.mrf.mxu0
      %v864 = vadd.f32 0.0, %v863
      %v865 = vpop.f32.mrf.mxu0
      %866 = vmatprep.mubr.bf16.mxu0 0
      %867 = vmatmul.mubr.bf16.gmra.mxu0 %v723
      %v868 = vpop.f32.mrf.mxu0
      %v869 = vadd.f32 0.0, %v868
      %v870 = vpop.f32.mrf.mxu0
      %v871 = vpop.f32.mrf.mxu0
      %v872 = vadd.f32 0.0, %v871
      %v873 = vpop.f32.mrf.mxu0
      %874 = vmatprep.mubr.bf16.mxu0 0
      %875 = vmatmul.mubr.bf16.gmra.mxu0 %v726
      %v876 = vpop.f32.mrf.mxu0
      %v877 = vadd.f32 0.0, %v876
      %v878 = vpop.f32.mrf.mxu0
      %v879 = vpop.f32.mrf.mxu0
      %v880 = vadd.f32 0.0, %v879
      %v881 = vpop.f32.mrf.mxu0
      %882 = vmatprep.mubr.bf16.mxu0 0
      %883 = vmatmul.mubr.bf16.gmra.mxu0 %v729
      %v884 = vpop.f32.mrf.mxu0
      %v885 = vadd.f32 0.0, %v884
      %v886 = vpop.f32.mrf.mxu0
      %v887 = vpop.f32.mrf.mxu0
      %v888 = vadd.f32 0.0, %v887
      %v889 = vpop.f32.mrf.mxu0
      %890 = vmatprep.mubr.bf16.mxu0 0
      %891 = vmatmul.mubr.bf16.gmra.mxu0 %v732
      %v892 = vpop.f32.mrf.mxu0
      %v893 = vadd.f32 0.0, %v892
      %v894 = vpop.f32.mrf.mxu0
      %v895 = vpop.f32.mrf.mxu0
      %v896 = vadd.f32 0.0, %v895
      %v897 = vpop.f32.mrf.mxu0
      %898 = vdwg.mxu0
      %vm899 = vcmask 523264
      %v900 = vsel %vm899, %v773, -inf
      %901 = vmax.xlane.f32.xlu0 %v900
      %v902 = vpop.xlane.xlu0 %901
      %v903 = vsel %vm899, %v776, -inf
      %904 = vmax.xlane.f32.xlu0 %v903
      %v905 = vpop.xlane.xlu0 %904
      %v906 = vsel %vm899, %v781, -inf
      %907 = vmax.xlane.f32.xlu0 %v906
      %v908 = vpop.xlane.xlu0 %907
      %v909 = vsel %vm899, %v784, -inf
      %910 = vmax.xlane.f32.xlu0 %v909
      %v911 = vpop.xlane.xlu0 %910
      %v912 = vsel %vm899, %v789, -inf
      %913 = vmax.xlane.f32.xlu0 %v912
      %v914 = vpop.xlane.xlu0 %913
      %v915 = vsel %vm899, %v792, -inf
      %916 = vmax.xlane.f32.xlu0 %v915
      %v917 = vpop.xlane.xlu0 %916
      %v918 = vsel %vm899, %v797, -inf
      %919 = vmax.xlane.f32.xlu0 %v918
      %v920 = vpop.xlane.xlu0 %919
      %v921 = vsel %vm899, %v800, -inf
      %922 = vmax.xlane.f32.xlu0 %v921
      %v923 = vpop.xlane.xlu0 %922
      %v924 = vsel %vm899, %v805, -inf
      %925 = vmax.xlane.f32.xlu0 %v924
      %v926 = vpop.xlane.xlu0 %925
      %v927 = vsel %vm899, %v808, -inf
      %928 = vmax.xlane.f32.xlu0 %v927
      %v929 = vpop.xlane.xlu0 %928
      %v930 = vsel %vm899, %v813, -inf
      %931 = vmax.xlane.f32.xlu0 %v930
      %v932 = vpop.xlane.xlu0 %931
      %v933 = vsel %vm899, %v816, -inf
      %934 = vmax.xlane.f32.xlu0 %v933
      %v935 = vpop.xlane.xlu0 %934
      %v936 = vsel %vm899, %v821, -inf
      %937 = vmax.xlane.f32.xlu0 %v936
      %v938 = vpop.xlane.xlu0 %937
      %v939 = vsel %vm899, %v824, -inf
      %940 = vmax.xlane.f32.xlu0 %v939
      %v941 = vpop.xlane.xlu0 %940
      %v942 = vsel %vm899, %v829, -inf
      %943 = vmax.xlane.f32.xlu0 %v942
      %v944 = vpop.xlane.xlu0 %943
      %v945 = vsel %vm899, %v832, -inf
      %946 = vmax.xlane.f32.xlu0 %v945
      %v947 = vpop.xlane.xlu0 %946
      %v948 = vsel %vm899, %v837, -inf
      %949 = vmax.xlane.f32.xlu0 %v948
      %v950 = vpop.xlane.xlu0 %949
      %v951 = vsel %vm899, %v840, -inf
      %952 = vmax.xlane.f32.xlu0 %v951
      %v953 = vpop.xlane.xlu0 %952
      %v954 = vsel %vm899, %v845, -inf
      %955 = vmax.xlane.f32.xlu0 %v954
      %v956 = vpop.xlane.xlu0 %955
      %v957 = vsel %vm899, %v848, -inf
      %958 = vmax.xlane.f32.xlu0 %v957
      %v959 = vpop.xlane.xlu0 %958
      %v960 = vsel %vm899, %v853, -inf
      %961 = vmax.xlane.f32.xlu0 %v960
      %v962 = vpop.xlane.xlu0 %961
      %v963 = vsel %vm899, %v856, -inf
      %964 = vmax.xlane.f32.xlu0 %v963
      %v965 = vpop.xlane.xlu0 %964
      %v966 = vsel %vm899, %v861, -inf
      %967 = vmax.xlane.f32.xlu0 %v966
      %v968 = vpop.xlane.xlu0 %967
      %v969 = vsel %vm899, %v864, -inf
      %970 = vmax.xlane.f32.xlu0 %v969
      %v971 = vpop.xlane.xlu0 %970
      %v972 = vsel %vm899, %v869, -inf
      %973 = vmax.xlane.f32.xlu0 %v972
      %v974 = vpop.xlane.xlu0 %973
      %v975 = vsel %vm899, %v872, -inf
      %976 = vmax.xlane.f32.xlu0 %v975
      %v977 = vpop.xlane.xlu0 %976
      %v978 = vsel %vm899, %v877, -inf
      %979 = vmax.xlane.f32.xlu0 %v978
      %v980 = vpop.xlane.xlu0 %979
      %v981 = vsel %vm899, %v880, -inf
      %982 = vmax.xlane.f32.xlu0 %v981
      %v983 = vpop.xlane.xlu0 %982
      %v984 = vsel %vm899, %v885, -inf
      %985 = vmax.xlane.f32.xlu0 %v984
      %v986 = vpop.xlane.xlu0 %985
      %v987 = vsel %vm899, %v888, -inf
      %988 = vmax.xlane.f32.xlu0 %v987
      %v989 = vpop.xlane.xlu0 %988
      %v990 = vsel %vm899, %v893, -inf
      %991 = vmax.xlane.f32.xlu0 %v990
      %v992 = vpop.xlane.xlu0 %991
      %v993 = vsel %vm899, %v896, -inf
      %994 = vmax.xlane.f32.xlu0 %v993
      %v995 = vpop.xlane.xlu0 %994
      %v996 = vsub.f32 %v773, %v902
      %v997 = vsub.f32 %v776, %v905
      %v998 = vsub.f32 %v781, %v908
      %v999 = vsub.f32 %v784, %v911
      %v1000 = vsub.f32 %v789, %v914
      %v1001 = vsub.f32 %v792, %v917
      %v1002 = vsub.f32 %v797, %v920
      %v1003 = vsub.f32 %v800, %v923
      %v1004 = vsub.f32 %v805, %v926
      %v1005 = vsub.f32 %v808, %v929
      %v1006 = vsub.f32 %v813, %v932
      %v1007 = vsub.f32 %v816, %v935
      %v1008 = vsub.f32 %v821, %v938
      %v1009 = vsub.f32 %v824, %v941
      %v1010 = vsub.f32 %v829, %v944
      %v1011 = vsub.f32 %v832, %v947
      %v1012 = vsub.f32 %v837, %v950
      %v1013 = vsub.f32 %v840, %v953
      %v1014 = vsub.f32 %v845, %v956
      %v1015 = vsub.f32 %v848, %v959
      %v1016 = vsub.f32 %v853, %v962
      %v1017 = vsub.f32 %v856, %v965
      %v1018 = vsub.f32 %v861, %v968
      %v1019 = vsub.f32 %v864, %v971
      %v1020 = vsub.f32 %v869, %v974
      %v1021 = vsub.f32 %v872, %v977
      %v1022 = vsub.f32 %v877, %v980
      %v1023 = vsub.f32 %v880, %v983
      %v1024 = vsub.f32 %v885, %v986
      %v1025 = vsub.f32 %v888, %v989
      %v1026 = vsub.f32 %v893, %v992
      %v1027 = vsub.f32 %v896, %v995
      %v1028 = vmul.f32 %v996, 1.442695
      %v1029 = vpow.pop %v1028
      %v1030 = vmul.f32 %v997, 1.442695
      %v1031 = vpow.pop %v1030
      %v1032 = vmul.f32 %v998, 1.442695
      %v1033 = vpow.pop %v1032
      %v1034 = vmul.f32 %v999, 1.442695
      %v1035 = vpow.pop %v1034
      %v1036 = vmul.f32 %v1000, 1.442695
      %v1037 = vpow.pop %v1036
      %v1038 = vmul.f32 %v1001, 1.442695
      %v1039 = vpow.pop %v1038
      %v1040 = vmul.f32 %v1002, 1.442695
      %v1041 = vpow.pop %v1040
      %v1042 = vmul.f32 %v1003, 1.442695
      %v1043 = vpow.pop %v1042
      %v1044 = vmul.f32 %v1004, 1.442695
      %v1045 = vpow.pop %v1044
      %v1046 = vmul.f32 %v1005, 1.442695
      %v1047 = vpow.pop %v1046
      %v1048 = vmul.f32 %v1006, 1.442695
      %v1049 = vpow.pop %v1048
      %v1050 = vmul.f32 %v1007, 1.442695
      %v1051 = vpow.pop %v1050
      %v1052 = vmul.f32 %v1008, 1.442695
      %v1053 = vpow.pop %v1052
      %v1054 = vmul.f32 %v1009, 1.442695
      %v1055 = vpow.pop %v1054
      %v1056 = vmul.f32 %v1010, 1.442695
      %v1057 = vpow.pop %v1056
      %v1058 = vmul.f32 %v1011, 1.442695
      %v1059 = vpow.pop %v1058
      %v1060 = vmul.f32 %v1012, 1.442695
      %v1061 = vpow.pop %v1060
      %v1062 = vmul.f32 %v1013, 1.442695
      %v1063 = vpow.pop %v1062
      %v1064 = vmul.f32 %v1014, 1.442695
      %v1065 = vpow.pop %v1064
      %v1066 = vmul.f32 %v1015, 1.442695
      %v1067 = vpow.pop %v1066
      %v1068 = vmul.f32 %v1016, 1.442695
      %v1069 = vpow.pop %v1068
      %v1070 = vmul.f32 %v1017, 1.442695
      %v1071 = vpow.pop %v1070
      %v1072 = vmul.f32 %v1018, 1.442695
      %v1073 = vpow.pop %v1072
      %v1074 = vmul.f32 %v1019, 1.442695
      %v1075 = vpow.pop %v1074
      %v1076 = vmul.f32 %v1020, 1.442695
      %v1077 = vpow.pop %v1076
      %v1078 = vmul.f32 %v1021, 1.442695
      %v1079 = vpow.pop %v1078
      %v1080 = vmul.f32 %v1022, 1.442695
      %v1081 = vpow.pop %v1080
      %v1082 = vmul.f32 %v1023, 1.442695
      %v1083 = vpow.pop %v1082
      %v1084 = vmul.f32 %v1024, 1.442695
      %v1085 = vpow.pop %v1084
      %v1086 = vmul.f32 %v1025, 1.442695
      %v1087 = vpow.pop %v1086
      %v1088 = vmul.f32 %v1026, 1.442695
      %v1089 = vpow.pop %v1088
      %v1090 = vmul.f32 %v1027, 1.442695
      %v1091 = vpow.pop %v1090
      %v1092 = vsel %vm899, %v1029, 0.0
      %1093 = vadd.xlane.f32.xlu0 %v1092
      %v1094 = vpop.xlane.xlu0 %1093
      %v1095 = vsel %vm899, %v1031, 0.0
      %1096 = vadd.xlane.f32.xlu0 %v1095
      %v1097 = vpop.xlane.xlu0 %1096
      %v1098 = vsel %vm899, %v1033, 0.0
      %1099 = vadd.xlane.f32.xlu0 %v1098
      %v1100 = vpop.xlane.xlu0 %1099
      %v1101 = vsel %vm899, %v1035, 0.0
      %1102 = vadd.xlane.f32.xlu0 %v1101
      %v1103 = vpop.xlane.xlu0 %1102
      %v1104 = vsel %vm899, %v1037, 0.0
      %1105 = vadd.xlane.f32.xlu0 %v1104
      %v1106 = vpop.xlane.xlu0 %1105
      %v1107 = vsel %vm899, %v1039, 0.0
      %1108 = vadd.xlane.f32.xlu0 %v1107
      %v1109 = vpop.xlane.xlu0 %1108
      %v1110 = vsel %vm899, %v1041, 0.0
      %1111 = vadd.xlane.f32.xlu0 %v1110
      %v1112 = vpop.xlane.xlu0 %1111
      %v1113 = vsel %vm899, %v1043, 0.0
      %1114 = vadd.xlane.f32.xlu0 %v1113
      %v1115 = vpop.xlane.xlu0 %1114
      %v1116 = vsel %vm899, %v1045, 0.0
      %1117 = vadd.xlane.f32.xlu0 %v1116
      %v1118 = vpop.xlane.xlu0 %1117
      %v1119 = vsel %vm899, %v1047, 0.0
      %1120 = vadd.xlane.f32.xlu0 %v1119
      %v1121 = vpop.xlane.xlu0 %1120
      %v1122 = vsel %vm899, %v1049, 0.0
      %1123 = vadd.xlane.f32.xlu0 %v1122
      %v1124 = vpop.xlane.xlu0 %1123
      %v1125 = vsel %vm899, %v1051, 0.0
      %1126 = vadd.xlane.f32.xlu0 %v1125
      %v1127 = vpop.xlane.xlu0 %1126
      %v1128 = vsel %vm899, %v1053, 0.0
      %1129 = vadd.xlane.f32.xlu0 %v1128
      %v1130 = vpop.xlane.xlu0 %1129
      %v1131 = vsel %vm899, %v1055, 0.0
      %1132 = vadd.xlane.f32.xlu0 %v1131
      %v1133 = vpop.xlane.xlu0 %1132
      %v1134 = vsel %vm899, %v1057, 0.0
      %1135 = vadd.xlane.f32.xlu0 %v1134
      %v1136 = vpop.xlane.xlu0 %1135
      %v1137 = vsel %vm899, %v1059, 0.0
      %1138 = vadd.xlane.f32.xlu0 %v1137
      %v1139 = vpop.xlane.xlu0 %1138
      %v1140 = vsel %vm899, %v1061, 0.0
      %1141 = vadd.xlane.f32.xlu0 %v1140
      %v1142 = vpop.xlane.xlu0 %1141
      %v1143 = vsel %vm899, %v1063, 0.0
      %1144 = vadd.xlane.f32.xlu0 %v1143
      %v1145 = vpop.xlane.xlu0 %1144
      %v1146 = vsel %vm899, %v1065, 0.0
      %1147 = vadd.xlane.f32.xlu0 %v1146
      %v1148 = vpop.xlane.xlu0 %1147
      %v1149 = vsel %vm899, %v1067, 0.0
      %1150 = vadd.xlane.f32.xlu0 %v1149
      %v1151 = vpop.xlane.xlu0 %1150
      %v1152 = vsel %vm899, %v1069, 0.0
      %1153 = vadd.xlane.f32.xlu0 %v1152
      %v1154 = vpop.xlane.xlu0 %1153
      %v1155 = vsel %vm899, %v1071, 0.0
      %1156 = vadd.xlane.f32.xlu0 %v1155
      %v1157 = vpop.xlane.xlu0 %1156
      %v1158 = vsel %vm899, %v1073, 0.0
      %1159 = vadd.xlane.f32.xlu0 %v1158
      %v1160 = vpop.xlane.xlu0 %1159
      %v1161 = vsel %vm899, %v1075, 0.0
      %1162 = vadd.xlane.f32.xlu0 %v1161
      %v1163 = vpop.xlane.xlu0 %1162
      %v1164 = vsel %vm899, %v1077, 0.0
      %1165 = vadd.xlane.f32.xlu0 %v1164
      %v1166 = vpop.xlane.xlu0 %1165
      %v1167 = vsel %vm899, %v1079, 0.0
      %1168 = vadd.xlane.f32.xlu0 %v1167
      %v1169 = vpop.xlane.xlu0 %1168
      %v1170 = vsel %vm899, %v1081, 0.0
      %1171 = vadd.xlane.f32.xlu0 %v1170
      %v1172 = vpop.xlane.xlu0 %1171
      %v1173 = vsel %vm899, %v1083, 0.0
      %1174 = vadd.xlane.f32.xlu0 %v1173
      %v1175 = vpop.xlane.xlu0 %1174
      %v1176 = vsel %vm899, %v1085, 0.0
      %1177 = vadd.xlane.f32.xlu0 %v1176
      %v1178 = vpop.xlane.xlu0 %1177
      %v1179 = vsel %vm899, %v1087, 0.0
      %1180 = vadd.xlane.f32.xlu0 %v1179
      %v1181 = vpop.xlane.xlu0 %1180
      %v1182 = vsel %vm899, %v1089, 0.0
      %1183 = vadd.xlane.f32.xlu0 %v1182
      %v1184 = vpop.xlane.xlu0 %1183
      %v1185 = vsel %vm899, %v1091, 0.0
      %1186 = vadd.xlane.f32.xlu0 %v1185
      %v1187 = vpop.xlane.xlu0 %1186
      %v1188 = vpack.c.bf16 %v1031, %v1029
      %v1189 = vpack.c.bf16 %v1035, %v1033
      %v1190 = vpack.c.bf16 %v1039, %v1037
      %v1191 = vpack.c.bf16 %v1043, %v1041
      %v1192 = vpack.c.bf16 %v1047, %v1045
      %v1193 = vpack.c.bf16 %v1051, %v1049
      %v1194 = vpack.c.bf16 %v1055, %v1053
      %v1195 = vpack.c.bf16 %v1059, %v1057
      %v1196 = vpack.c.bf16 %v1063, %v1061
      %v1197 = vpack.c.bf16 %v1067, %v1065
      %v1198 = vpack.c.bf16 %v1071, %v1069
      %v1199 = vpack.c.bf16 %v1075, %v1073
      %v1200 = vpack.c.bf16 %v1079, %v1077
      %v1201 = vpack.c.bf16 %v1083, %v1081
      %v1202 = vpack.c.bf16 %v1087, %v1085
      %v1203 = vpack.c.bf16 %v1091, %v1089
      %v1204 = vld [vmem:[%s318] sm:$0xf]
      %v1205 = vld [vmem:[%s318 + $0x4] sm:$0xf]
      %v1206 = vld [vmem:[%s318 + $0x8] sm:$0xf]
      %v1207 = vld [vmem:[%s318 + $0xc] sm:$0xf]
      %v1208 = vld [vmem:[%s318 + $0x10] sm:$0xf]
      %v1209 = vld [vmem:[%s318 + $0x14] sm:$0xf]
      %v1210 = vld [vmem:[%s318 + $0x18] sm:$0xf]
      %v1211 = vld [vmem:[%s318 + $0x1c] sm:$0xf]
      %v1220 = vunpack.c.l.b16 %v1204
      %v1221 = vunpack.c.l.b16 %v1205
      %v1222 = vunpack.c.l.b16 %v1206
      %v1223 = vunpack.c.l.b16 %v1207
      %v1224 = vunpack.c.l.b16 %v1208
      %v1225 = vunpack.c.l.b16 %v1209
      %v1226 = vunpack.c.l.b16 %v1210
      %v1227 = vunpack.c.l.b16 %v1211
      %v1228 = vpack.c.b16 %v1221, %v1220
      %v1229 = vpack.c.b16 %v1223, %v1222
      %v1230 = vpack.c.b16 %v1225, %v1224
      %v1231 = vpack.c.b16 %v1227, %v1226
      %v1237 = vsel %vm899, %v1188, 0
      %v1240 = vsel %vm899, %v1189, 0
      %v1243 = vsel %vm899, %v1190, 0
      %v1246 = vsel %vm899, %v1191, 0
      %v1249 = vsel %vm899, %v1192, 0
      %v1252 = vsel %vm899, %v1193, 0
      %v1255 = vsel %vm899, %v1194, 0
      %v1258 = vsel %vm899, %v1195, 0
      %v1261 = vsel %vm899, %v1196, 0
      %v1264 = vsel %vm899, %v1197, 0
      %v1267 = vsel %vm899, %v1198, 0
      %v1270 = vsel %vm899, %v1199, 0
      %v1273 = vsel %vm899, %v1200, 0
      %v1276 = vsel %vm899, %v1201, 0
      %v1279 = vsel %vm899, %v1202, 0
      %v1282 = vsel %vm899, %v1203, 0
      %1284 = vmatprep.subr.bf16.mxu0 0
      %1285 = vmatpush1.bf16.msra.mxu0 0
      %1286 = vmatprep.subr.bf16.mxu0 0
      %1287 = vmatpush1.bf16.msra.mxu0 0
      %1288 = vmatprep.subr.bf16.mxu0 0
      %1289 = vmatpush1.bf16.msra.mxu0 0
      %1290 = vmatprep.subr.bf16.mxu0 0
      %1291 = vmatpush1.bf16.msra.mxu0 0
      %1292 = vmatprep.subr.bf16.mxu0 0
      %1293 = vmatpush1.bf16.msra.mxu0 %v1231
      %1294 = vmatprep.subr.bf16.mxu0 0
      %1295 = vmatpush1.bf16.msra.mxu0 %v1230
      %1296 = vmatprep.subr.bf16.mxu0 0
      %1297 = vmatpush1.bf16.msra.mxu0 %v1229
      %1298 = vmatprep.subr.bf16.mxu0 0
      %1299 = vmatpush1.bf16.msra.mxu0 %v1228
      %1300 = vmatprep.subr.bf16.mxu0 0
      %1301 = vmatpush2.bf16.msra.mxu0 0
      %1302 = vmatprep.subr.bf16.mxu0 0
      %1303 = vmatpush2.bf16.msra.mxu0 0
      %1304 = vmatprep.subr.bf16.mxu0 0
      %1305 = vmatpush2.bf16.msra.mxu0 0
      %1306 = vmatprep.subr.bf16.mxu0 0
      %1307 = vmatpush2.bf16.msra.mxu0 0
      %1308 = vmatprep.subr.bf16.mxu0 0
      %1309 = vmatpush2.bf16.msra.mxu0 0
      %1310 = vmatprep.subr.bf16.mxu0 0
      %1311 = vmatpush2.bf16.msra.mxu0 0
      %1312 = vmatprep.subr.bf16.mxu0 0
      %1313 = vmatpush2.bf16.msra.mxu0 0
      %1314 = vmatprep.subr.bf16.mxu0 0
      %1315 = vmatpush2.bf16.msra.mxu0 0
      %1316 = vmatprep.mubr.bf16.mxu0 0
      %1317 = vmatmul.mubr.bf16.gmra.mxu0 %v1237
      %v1318 = vpop.f32.mrf.mxu0
      %v1319 = vadd.f32 0.0, %v1318
      %v1320 = vpop.f32.mrf.mxu0
      %v1321 = vpop.f32.mrf.mxu0
      %v1322 = vadd.f32 0.0, %v1321
      %v1323 = vpop.f32.mrf.mxu0
      %1324 = vmatprep.mubr.bf16.mxu0 0
      %1325 = vmatmul.mubr.bf16.gmra.mxu0 %v1240
      %v1326 = vpop.f32.mrf.mxu0
      %v1327 = vadd.f32 0.0, %v1326
      %v1328 = vpop.f32.mrf.mxu0
      %v1329 = vpop.f32.mrf.mxu0
      %v1330 = vadd.f32 0.0, %v1329
      %v1331 = vpop.f32.mrf.mxu0
      %1332 = vmatprep.mubr.bf16.mxu0 0
      %1333 = vmatmul.mubr.bf16.gmra.mxu0 %v1243
      %v1334 = vpop.f32.mrf.mxu0
      %v1335 = vadd.f32 0.0, %v1334
      %v1336 = vpop.f32.mrf.mxu0
      %v1337 = vpop.f32.mrf.mxu0
      %v1338 = vadd.f32 0.0, %v1337
      %v1339 = vpop.f32.mrf.mxu0
      %1340 = vmatprep.mubr.bf16.mxu0 0
      %1341 = vmatmul.mubr.bf16.gmra.mxu0 %v1246
      %v1342 = vpop.f32.mrf.mxu0
      %v1343 = vadd.f32 0.0, %v1342
      %v1344 = vpop.f32.mrf.mxu0
      %v1345 = vpop.f32.mrf.mxu0
      %v1346 = vadd.f32 0.0, %v1345
      %v1347 = vpop.f32.mrf.mxu0
      %1348 = vmatprep.mubr.bf16.mxu0 0
      %1349 = vmatmul.mubr.bf16.gmra.mxu0 %v1249
      %v1350 = vpop.f32.mrf.mxu0
      %v1351 = vadd.f32 0.0, %v1350
      %v1352 = vpop.f32.mrf.mxu0
      %v1353 = vpop.f32.mrf.mxu0
      %v1354 = vadd.f32 0.0, %v1353
      %v1355 = vpop.f32.mrf.mxu0
      %1356 = vmatprep.mubr.bf16.mxu0 0
      %1357 = vmatmul.mubr.bf16.gmra.mxu0 %v1252
      %v1358 = vpop.f32.mrf.mxu0
      %v1359 = vadd.f32 0.0, %v1358
      %v1360 = vpop.f32.mrf.mxu0
      %v1361 = vpop.f32.mrf.mxu0
      %v1362 = vadd.f32 0.0, %v1361
      %v1363 = vpop.f32.mrf.mxu0
      %1364 = vmatprep.mubr.bf16.mxu0 0
      %1365 = vmatmul.mubr.bf16.gmra.mxu0 %v1255
      %v1366 = vpop.f32.mrf.mxu0
      %v1367 = vadd.f32 0.0, %v1366
      %v1368 = vpop.f32.mrf.mxu0
      %v1369 = vpop.f32.mrf.mxu0
      %v1370 = vadd.f32 0.0, %v1369
      %v1371 = vpop.f32.mrf.mxu0
      %1372 = vmatprep.mubr.bf16.mxu0 0
      %1373 = vmatmul.mubr.bf16.gmra.mxu0 %v1258
      %v1374 = vpop.f32.mrf.mxu0
      %v1375 = vadd.f32 0.0, %v1374
      %v1376 = vpop.f32.mrf.mxu0
      %v1377 = vpop.f32.mrf.mxu0
      %v1378 = vadd.f32 0.0, %v1377
      %v1379 = vpop.f32.mrf.mxu0
      %1380 = vmatprep.mubr.bf16.mxu0 0
      %1381 = vmatmul.mubr.bf16.gmra.mxu0 %v1261
      %v1382 = vpop.f32.mrf.mxu0
      %v1383 = vadd.f32 0.0, %v1382
      %v1384 = vpop.f32.mrf.mxu0
      %v1385 = vpop.f32.mrf.mxu0
      %v1386 = vadd.f32 0.0, %v1385
      %v1387 = vpop.f32.mrf.mxu0
      %1388 = vmatprep.mubr.bf16.mxu0 0
      %1389 = vmatmul.mubr.bf16.gmra.mxu0 %v1264
      %v1390 = vpop.f32.mrf.mxu0
      %v1391 = vadd.f32 0.0, %v1390
      %v1392 = vpop.f32.mrf.mxu0
      %v1393 = vpop.f32.mrf.mxu0
      %v1394 = vadd.f32 0.0, %v1393
      %v1395 = vpop.f32.mrf.mxu0
      %1396 = vmatprep.mubr.bf16.mxu0 0
      %1397 = vmatmul.mubr.bf16.gmra.mxu0 %v1267
      %v1398 = vpop.f32.mrf.mxu0
      %v1399 = vadd.f32 0.0, %v1398
      %v1400 = vpop.f32.mrf.mxu0
      %v1401 = vpop.f32.mrf.mxu0
      %v1402 = vadd.f32 0.0, %v1401
      %v1403 = vpop.f32.mrf.mxu0
      %1404 = vmatprep.mubr.bf16.mxu0 0
      %1405 = vmatmul.mubr.bf16.gmra.mxu0 %v1270
      %v1406 = vpop.f32.mrf.mxu0
      %v1407 = vadd.f32 0.0, %v1406
      %v1408 = vpop.f32.mrf.mxu0
      %v1409 = vpop.f32.mrf.mxu0
      %v1410 = vadd.f32 0.0, %v1409
      %v1411 = vpop.f32.mrf.mxu0
      %1412 = vmatprep.mubr.bf16.mxu0 0
      %1413 = vmatmul.mubr.bf16.gmra.mxu0 %v1273
      %v1414 = vpop.f32.mrf.mxu0
      %v1415 = vadd.f32 0.0, %v1414
      %v1416 = vpop.f32.mrf.mxu0
      %v1417 = vpop.f32.mrf.mxu0
      %v1418 = vadd.f32 0.0, %v1417
      %v1419 = vpop.f32.mrf.mxu0
      %1420 = vmatprep.mubr.bf16.mxu0 0
      %1421 = vmatmul.mubr.bf16.gmra.mxu0 %v1276
      %v1422 = vpop.f32.mrf.mxu0
      %v1423 = vadd.f32 0.0, %v1422
      %v1424 = vpop.f32.mrf.mxu0
      %v1425 = vpop.f32.mrf.mxu0
      %v1426 = vadd.f32 0.0, %v1425
      %v1427 = vpop.f32.mrf.mxu0
      %1428 = vmatprep.mubr.bf16.mxu0 0
      %1429 = vmatmul.mubr.bf16.gmra.mxu0 %v1279
      %v1430 = vpop.f32.mrf.mxu0
      %v1431 = vadd.f32 0.0, %v1430
      %v1432 = vpop.f32.mrf.mxu0
      %v1433 = vpop.f32.mrf.mxu0
      %v1434 = vadd.f32 0.0, %v1433
      %v1435 = vpop.f32.mrf.mxu0
      %1436 = vmatprep.mubr.bf16.mxu0 0
      %1437 = vmatmul.mubr.bf16.gmra.mxu0 %v1282
      %v1438 = vpop.f32.mrf.mxu0
      %v1439 = vadd.f32 0.0, %v1438
      %v1440 = vpop.f32.mrf.mxu0
      %v1441 = vpop.f32.mrf.mxu0
      %v1442 = vadd.f32 0.0, %v1441
      %v1443 = vpop.f32.mrf.mxu0
      %1444 = vdwg.mxu0
      %v1445 = vpack.c.bf16 %v1322, %v1319
      %v1446 = vpack.c.bf16 %v1330, %v1327
      %v1447 = vpack.c.bf16 %v1338, %v1335
      %v1448 = vpack.c.bf16 %v1346, %v1343
      %v1449 = vpack.c.bf16 %v1354, %v1351
      %v1450 = vpack.c.bf16 %v1362, %v1359
      %v1451 = vpack.c.bf16 %v1370, %v1367
      %v1452 = vpack.c.bf16 %v1378, %v1375
      %v1453 = vpack.c.bf16 %v1386, %v1383
      %v1454 = vpack.c.bf16 %v1394, %v1391
      %v1455 = vpack.c.bf16 %v1402, %v1399
      %v1456 = vpack.c.bf16 %v1410, %v1407
      %v1457 = vpack.c.bf16 %v1418, %v1415
      %v1458 = vpack.c.bf16 %v1426, %v1423
      %v1459 = vpack.c.bf16 %v1434, %v1431
      %v1460 = vpack.c.bf16 %v1442, %v1439
      %v1461 = vld [vmem:[%s4] sm:$0xf]
      %v1462 = vld [vmem:[%s4 + $0x4] sm:$0xf]
      %v1465 = vunpack.c.l.b16 %v1461
      %v1466 = vunpack.c.l.b16 %v1462
      %v1467 = vpack.c.b16 %v1466, %v1465
      %vm1469 = vcmask 130048
      %v1471 = vsel %vm1469, %v1445, 0
      %v1474 = vsel %vm1469, %v1446, 0
      %v1477 = vsel %vm1469, %v1447, 0
      %v1480 = vsel %vm1469, %v1448, 0
      %v1483 = vsel %vm1469, %v1449, 0
      %v1486 = vsel %vm1469, %v1450, 0
      %v1489 = vsel %vm1469, %v1451, 0
      %v1492 = vsel %vm1469, %v1452, 0
      %v1495 = vsel %vm1469, %v1453, 0
      %v1498 = vsel %vm1469, %v1454, 0
      %v1501 = vsel %vm1469, %v1455, 0
      %v1504 = vsel %vm1469, %v1456, 0
      %v1507 = vsel %vm1469, %v1457, 0
      %v1510 = vsel %vm1469, %v1458, 0
      %v1513 = vsel %vm1469, %v1459, 0
      %v1516 = vsel %vm1469, %v1460, 0
      %1518 = vmatprep.subr.bf16.mxu0 0
      %1519 = vmatpush1.bf16.msra.mxu0 0
      %1520 = vmatprep.subr.bf16.mxu0 0
      %1521 = vmatpush1.bf16.msra.mxu0 0
      %1522 = vmatprep.subr.bf16.mxu0 0
      %1523 = vmatpush1.bf16.msra.mxu0 0
      %1524 = vmatprep.subr.bf16.mxu0 0
      %1525 = vmatpush1.bf16.msra.mxu0 0
      %1526 = vmatprep.subr.bf16.mxu0 0
      %1527 = vmatpush1.bf16.msra.mxu0 0
      %1528 = vmatprep.subr.bf16.mxu0 0
      %1529 = vmatpush1.bf16.msra.mxu0 0
      %1530 = vmatprep.subr.bf16.mxu0 0
      %1531 = vmatpush1.bf16.msra.mxu0 0
      %1532 = vmatprep.subr.bf16.mxu0 0
      %1533 = vmatpush1.bf16.msra.mxu0 %v1467
      %1534 = vmatprep.subr.bf16.mxu0 0
      %1535 = vmatpush2.bf16.msra.mxu0 0
      %1536 = vmatprep.subr.bf16.mxu0 0
      %1537 = vmatpush2.bf16.msra.mxu0 0
      %1538 = vmatprep.subr.bf16.mxu0 0
      %1539 = vmatpush2.bf16.msra.mxu0 0
      %1540 = vmatprep.subr.bf16.mxu0 0
      %1541 = vmatpush2.bf16.msra.mxu0 0
      %1542 = vmatprep.subr.bf16.mxu0 0
      %1543 = vmatpush2.bf16.msra.mxu0 0
      %1544 = vmatprep.subr.bf16.mxu0 0
      %1545 = vmatpush2.bf16.msra.mxu0 0
      %1546 = vmatprep.subr.bf16.mxu0 0
      %1547 = vmatpush2.bf16.msra.mxu0 0
      %1548 = vmatprep.subr.bf16.mxu0 0
      %1549 = vmatpush2.bf16.msra.mxu0 0
      %1550 = vmatprep.mubr.bf16.mxu0 0
      %1551 = vmatmul.mubr.bf16.gmra.mxu0 %v1471
      %v1552 = vpop.f32.mrf.mxu0
      %v1553 = vadd.f32 0.0, %v1552
      %v1554 = vpop.f32.mrf.mxu0
      %v1555 = vpop.f32.mrf.mxu0
      %v1556 = vadd.f32 0.0, %v1555
      %v1557 = vpop.f32.mrf.mxu0
      %1558 = vmatprep.mubr.bf16.mxu0 0
      %1559 = vmatmul.mubr.bf16.gmra.mxu0 %v1474
      %v1560 = vpop.f32.mrf.mxu0
      %v1561 = vadd.f32 0.0, %v1560
      %v1562 = vpop.f32.mrf.mxu0
      %v1563 = vpop.f32.mrf.mxu0
      %v1564 = vadd.f32 0.0, %v1563
      %v1565 = vpop.f32.mrf.mxu0
      %1566 = vmatprep.mubr.bf16.mxu0 0
      %1567 = vmatmul.mubr.bf16.gmra.mxu0 %v1477
      %v1568 = vpop.f32.mrf.mxu0
      %v1569 = vadd.f32 0.0, %v1568
      %v1570 = vpop.f32.mrf.mxu0
      %v1571 = vpop.f32.mrf.mxu0
      %v1572 = vadd.f32 0.0, %v1571
      %v1573 = vpop.f32.mrf.mxu0
      %1574 = vmatprep.mubr.bf16.mxu0 0
      %1575 = vmatmul.mubr.bf16.gmra.mxu0 %v1480
      %v1576 = vpop.f32.mrf.mxu0
      %v1577 = vadd.f32 0.0, %v1576
      %v1578 = vpop.f32.mrf.mxu0
      %v1579 = vpop.f32.mrf.mxu0
      %v1580 = vadd.f32 0.0, %v1579
      %v1581 = vpop.f32.mrf.mxu0
      %1582 = vmatprep.mubr.bf16.mxu0 0
      %1583 = vmatmul.mubr.bf16.gmra.mxu0 %v1483
      %v1584 = vpop.f32.mrf.mxu0
      %v1585 = vadd.f32 0.0, %v1584
      %v1586 = vpop.f32.mrf.mxu0
      %v1587 = vpop.f32.mrf.mxu0
      %v1588 = vadd.f32 0.0, %v1587
      %v1589 = vpop.f32.mrf.mxu0
      %1590 = vmatprep.mubr.bf16.mxu0 0
      %1591 = vmatmul.mubr.bf16.gmra.mxu0 %v1486
      %v1592 = vpop.f32.mrf.mxu0
      %v1593 = vadd.f32 0.0, %v1592
      %v1594 = vpop.f32.mrf.mxu0
      %v1595 = vpop.f32.mrf.mxu0
      %v1596 = vadd.f32 0.0, %v1595
      %v1597 = vpop.f32.mrf.mxu0
      %1598 = vmatprep.mubr.bf16.mxu0 0
      %1599 = vmatmul.mubr.bf16.gmra.mxu0 %v1489
      %v1600 = vpop.f32.mrf.mxu0
      %v1601 = vadd.f32 0.0, %v1600
      %v1602 = vpop.f32.mrf.mxu0
      %v1603 = vpop.f32.mrf.mxu0
      %v1604 = vadd.f32 0.0, %v1603
      %v1605 = vpop.f32.mrf.mxu0
      %1606 = vmatprep.mubr.bf16.mxu0 0
      %1607 = vmatmul.mubr.bf16.gmra.mxu0 %v1492
      %v1608 = vpop.f32.mrf.mxu0
      %v1609 = vadd.f32 0.0, %v1608
      %v1610 = vpop.f32.mrf.mxu0
      %v1611 = vpop.f32.mrf.mxu0
      %v1612 = vadd.f32 0.0, %v1611
      %v1613 = vpop.f32.mrf.mxu0
      %1614 = vmatprep.mubr.bf16.mxu0 0
      %1615 = vmatmul.mubr.bf16.gmra.mxu0 %v1495
      %v1616 = vpop.f32.mrf.mxu0
      %v1617 = vadd.f32 0.0, %v1616
      %v1618 = vpop.f32.mrf.mxu0
      %v1619 = vpop.f32.mrf.mxu0
      %v1620 = vadd.f32 0.0, %v1619
      %v1621 = vpop.f32.mrf.mxu0
      %1622 = vmatprep.mubr.bf16.mxu0 0
      %1623 = vmatmul.mubr.bf16.gmra.mxu0 %v1498
      %v1624 = vpop.f32.mrf.mxu0
      %v1625 = vadd.f32 0.0, %v1624
      %v1626 = vpop.f32.mrf.mxu0
      %v1627 = vpop.f32.mrf.mxu0
      %v1628 = vadd.f32 0.0, %v1627
      %v1629 = vpop.f32.mrf.mxu0
      %1630 = vmatprep.mubr.bf16.mxu0 0
      %1631 = vmatmul.mubr.bf16.gmra.mxu0 %v1501
      %v1632 = vpop.f32.mrf.mxu0
      %v1633 = vadd.f32 0.0, %v1632
      %v1634 = vpop.f32.mrf.mxu0
      %v1635 = vpop.f32.mrf.mxu0
      %v1636 = vadd.f32 0.0, %v1635
      %v1637 = vpop.f32.mrf.mxu0
      %1638 = vmatprep.mubr.bf16.mxu0 0
      %1639 = vmatmul.mubr.bf16.gmra.mxu0 %v1504
      %v1640 = vpop.f32.mrf.mxu0
      %v1641 = vadd.f32 0.0, %v1640
      %v1642 = vpop.f32.mrf.mxu0
      %v1643 = vpop.f32.mrf.mxu0
      %v1644 = vadd.f32 0.0, %v1643
      %v1645 = vpop.f32.mrf.mxu0
      %1646 = vmatprep.mubr.bf16.mxu0 0
      %1647 = vmatmul.mubr.bf16.gmra.mxu0 %v1507
      %v1648 = vpop.f32.mrf.mxu0
      %v1649 = vadd.f32 0.0, %v1648
      %v1650 = vpop.f32.mrf.mxu0
      %v1651 = vpop.f32.mrf.mxu0
      %v1652 = vadd.f32 0.0, %v1651
      %v1653 = vpop.f32.mrf.mxu0
      %1654 = vmatprep.mubr.bf16.mxu0 0
      %1655 = vmatmul.mubr.bf16.gmra.mxu0 %v1510
      %v1656 = vpop.f32.mrf.mxu0
      %v1657 = vadd.f32 0.0, %v1656
      %v1658 = vpop.f32.mrf.mxu0
      %v1659 = vpop.f32.mrf.mxu0
      %v1660 = vadd.f32 0.0, %v1659
      %v1661 = vpop.f32.mrf.mxu0
      %1662 = vmatprep.mubr.bf16.mxu0 0
      %1663 = vmatmul.mubr.bf16.gmra.mxu0 %v1513
      %v1664 = vpop.f32.mrf.mxu0
      %v1665 = vadd.f32 0.0, %v1664
      %v1666 = vpop.f32.mrf.mxu0
      %v1667 = vpop.f32.mrf.mxu0
      %v1668 = vadd.f32 0.0, %v1667
      %v1669 = vpop.f32.mrf.mxu0
      %1670 = vmatprep.mubr.bf16.mxu0 0
      %1671 = vmatmul.mubr.bf16.gmra.mxu0 %v1516
      %v1672 = vpop.f32.mrf.mxu0
      %v1673 = vadd.f32 0.0, %v1672
      %v1674 = vpop.f32.mrf.mxu0
      %v1675 = vpop.f32.mrf.mxu0
      %v1676 = vadd.f32 0.0, %v1675
      %v1677 = vpop.f32.mrf.mxu0
      %1678 = vdwg.mxu0
      %s1679 = sld [smem:[#allocation2]]
      %v1680 = vrcp.pop %v1094
      %v1681 = vrcp.pop %v1097
      %v1682 = vrcp.pop %v1100
      %v1683 = vrcp.pop %v1103
      %v1684 = vrcp.pop %v1106
      %v1685 = vrcp.pop %v1109
      %v1686 = vrcp.pop %v1112
      %v1687 = vrcp.pop %v1115
      %v1688 = vrcp.pop %v1118
      %v1689 = vrcp.pop %v1121
      %v1690 = vrcp.pop %v1124
      %v1691 = vrcp.pop %v1127
      %v1692 = vrcp.pop %v1130
      %v1693 = vrcp.pop %v1133
      %v1694 = vrcp.pop %v1136
      %v1695 = vrcp.pop %v1139
      %v1696 = vrcp.pop %v1142
      %v1697 = vrcp.pop %v1145
      %v1698 = vrcp.pop %v1148
      %v1699 = vrcp.pop %v1151
      %v1700 = vrcp.pop %v1154
      %v1701 = vrcp.pop %v1157
      %v1702 = vrcp.pop %v1160
      %v1703 = vrcp.pop %v1163
      %v1704 = vrcp.pop %v1166
      %v1705 = vrcp.pop %v1169
      %v1706 = vrcp.pop %v1172
      %v1707 = vrcp.pop %v1175
      %v1708 = vrcp.pop %v1178
      %v1709 = vrcp.pop %v1181
      %v1710 = vrcp.pop %v1184
      %v1711 = vrcp.pop %v1187
      %v1712 = vstv %s1679
      %v1713 = vmul.f32 %v1712, %v1680
      %v1714 = vmul.f32 %v1712, %v1681
      %v1715 = vmul.f32 %v1712, %v1682
      %v1716 = vmul.f32 %v1712, %v1683
      %v1717 = vmul.f32 %v1712, %v1684
      %v1718 = vmul.f32 %v1712, %v1685
      %v1719 = vmul.f32 %v1712, %v1686
      %v1720 = vmul.f32 %v1712, %v1687
      %v1721 = vmul.f32 %v1712, %v1688
      %v1722 = vmul.f32 %v1712, %v1689
      %v1723 = vmul.f32 %v1712, %v1690
      %v1724 = vmul.f32 %v1712, %v1691
      %v1725 = vmul.f32 %v1712, %v1692
      %v1726 = vmul.f32 %v1712, %v1693
      %v1727 = vmul.f32 %v1712, %v1694
      %v1728 = vmul.f32 %v1712, %v1695
      %v1729 = vmul.f32 %v1712, %v1696
      %v1730 = vmul.f32 %v1712, %v1697
      %v1731 = vmul.f32 %v1712, %v1698
      %v1732 = vmul.f32 %v1712, %v1699
      %v1733 = vmul.f32 %v1712, %v1700
      %v1734 = vmul.f32 %v1712, %v1701
      %v1735 = vmul.f32 %v1712, %v1702
      %v1736 = vmul.f32 %v1712, %v1703
      %v1737 = vmul.f32 %v1712, %v1704
      %v1738 = vmul.f32 %v1712, %v1705
      %v1739 = vmul.f32 %v1712, %v1706
      %v1740 = vmul.f32 %v1712, %v1707
      %v1741 = vmul.f32 %v1712, %v1708
      %v1742 = vmul.f32 %v1712, %v1709
      %v1743 = vmul.f32 %v1712, %v1710
      %v1744 = vmul.f32 %v1712, %v1711
      %v1745 = vmul.f32 %v1713, %v1553
      %v1746 = vmul.f32 %v1714, %v1556
      %v1747 = vmul.f32 %v1715, %v1561
      %v1748 = vmul.f32 %v1716, %v1564
      %v1749 = vmul.f32 %v1717, %v1569
      %v1750 = vmul.f32 %v1718, %v1572
      %v1751 = vmul.f32 %v1719, %v1577
      %v1752 = vmul.f32 %v1720, %v1580
      %v1753 = vmul.f32 %v1721, %v1585
      %v1754 = vmul.f32 %v1722, %v1588
      %v1755 = vmul.f32 %v1723, %v1593
      %v1756 = vmul.f32 %v1724, %v1596
      %v1757 = vmul.f32 %v1725, %v1601
      %v1758 = vmul.f32 %v1726, %v1604
      %v1759 = vmul.f32 %v1727, %v1609
      %v1760 = vmul.f32 %v1728, %v1612
      %v1761 = vmul.f32 %v1729, %v1617
      %v1762 = vmul.f32 %v1730, %v1620
      %v1763 = vmul.f32 %v1731, %v1625
      %v1764 = vmul.f32 %v1732, %v1628
      %v1765 = vmul.f32 %v1733, %v1633
      %v1766 = vmul.f32 %v1734, %v1636
      %v1767 = vmul.f32 %v1735, %v1641
      %v1768 = vmul.f32 %v1736, %v1644
      %v1769 = vmul.f32 %v1737, %v1649
      %v1770 = vmul.f32 %v1738, %v1652
      %v1771 = vmul.f32 %v1739, %v1657
      %v1772 = vmul.f32 %v1740, %v1660
      %v1773 = vmul.f32 %v1741, %v1665
      %v1774 = vmul.f32 %v1742, %v1668
      %v1775 = vmul.f32 %v1743, %v1673
      %v1776 = vmul.f32 %v1744, %v1676
      %v1777 = vunpack.c.l.bf16 %v330
      %v1778 = vunpack.c.l.bf16 %v331
      %v1779 = vunpack.c.l.bf16 %v332
      %v1780 = vunpack.c.l.bf16 %v333
      %v1781 = vunpack.c.l.bf16 %v334
      %v1782 = vunpack.c.l.bf16 %v335
      %v1783 = vunpack.c.l.bf16 %v336
      %v1784 = vunpack.c.l.bf16 %v337
      %v1785 = vunpack.c.l.bf16 %v338
      %v1786 = vunpack.c.l.bf16 %v339
      %v1787 = vunpack.c.l.bf16 %v340
      %v1788 = vunpack.c.l.bf16 %v341
      %v1789 = vunpack.c.l.bf16 %v342
      %v1790 = vunpack.c.l.bf16 %v343
      %v1791 = vunpack.c.l.bf16 %v344
      %v1792 = vunpack.c.l.bf16 %v345
      %v1793 = vunpack.c.l.bf16 %v346
      %v1794 = vunpack.c.l.bf16 %v347
      %v1795 = vunpack.c.l.bf16 %v348
      %v1796 = vunpack.c.l.bf16 %v349
      %v1797 = vunpack.c.l.bf16 %v350
      %v1798 = vunpack.c.l.bf16 %v351
      %v1799 = vunpack.c.l.bf16 %v352
      %v1800 = vunpack.c.l.bf16 %v353
      %v1801 = vunpack.c.l.bf16 %v354
      %v1802 = vunpack.c.l.bf16 %v355
      %v1803 = vunpack.c.l.bf16 %v356
      %v1804 = vunpack.c.l.bf16 %v357
      %v1805 = vunpack.c.l.bf16 %v358
      %v1806 = vunpack.c.l.bf16 %v359
      %v1807 = vunpack.c.l.bf16 %v360
      %v1808 = vunpack.c.l.bf16 %v361
      %v1809 = vadd.f32 %v1745, %v1777
      %v1810 = vadd.f32 %v1746, %v1778
      %v1811 = vadd.f32 %v1747, %v1779
      %v1812 = vadd.f32 %v1748, %v1780
      %v1813 = vadd.f32 %v1749, %v1781
      %v1814 = vadd.f32 %v1750, %v1782
      %v1815 = vadd.f32 %v1751, %v1783
      %v1816 = vadd.f32 %v1752, %v1784
      %v1817 = vadd.f32 %v1753, %v1785
      %v1818 = vadd.f32 %v1754, %v1786
      %v1819 = vadd.f32 %v1755, %v1787
      %v1820 = vadd.f32 %v1756, %v1788
      %v1821 = vadd.f32 %v1757, %v1789
      %v1822 = vadd.f32 %v1758, %v1790
      %v1823 = vadd.f32 %v1759, %v1791
      %v1824 = vadd.f32 %v1760, %v1792
      %v1825 = vadd.f32 %v1761, %v1793
      %v1826 = vadd.f32 %v1762, %v1794
      %v1827 = vadd.f32 %v1763, %v1795
      %v1828 = vadd.f32 %v1764, %v1796
      %v1829 = vadd.f32 %v1765, %v1797
      %v1830 = vadd.f32 %v1766, %v1798
      %v1831 = vadd.f32 %v1767, %v1799
      %v1832 = vadd.f32 %v1768, %v1800
      %v1833 = vadd.f32 %v1769, %v1801
      %v1834 = vadd.f32 %v1770, %v1802
      %v1835 = vadd.f32 %v1771, %v1803
      %v1836 = vadd.f32 %v1772, %v1804
      %v1837 = vadd.f32 %v1773, %v1805
      %v1838 = vadd.f32 %v1774, %v1806
      %v1839 = vadd.f32 %v1775, %v1807
      %v1840 = vadd.f32 %v1776, %v1808
      %v1841 = vpack.c.bf16 %v1810, %v1809
      %v1842 = vpack.c.bf16 %v1812, %v1811
      %v1843 = vpack.c.bf16 %v1814, %v1813
      %v1844 = vpack.c.bf16 %v1816, %v1815
      %v1845 = vpack.c.bf16 %v1818, %v1817
      %v1846 = vpack.c.bf16 %v1820, %v1819
      %v1847 = vpack.c.bf16 %v1822, %v1821
      %v1848 = vpack.c.bf16 %v1824, %v1823
      %v1849 = vpack.c.bf16 %v1826, %v1825
      %v1850 = vpack.c.bf16 %v1828, %v1827
      %v1851 = vpack.c.bf16 %v1830, %v1829
      %v1852 = vpack.c.bf16 %v1832, %v1831
      %v1853 = vpack.c.bf16 %v1834, %v1833
      %v1854 = vpack.c.bf16 %v1836, %v1835
      %v1855 = vpack.c.bf16 %v1838, %v1837
      %v1856 = vpack.c.bf16 %v1840, %v1839
      %v1873 = vunpack.c.l.b16 %v1841
      %v1874 = vunpack.c.h.b16 %v1841
      %v1875 = vunpack.c.l.b16 %v1842
      %v1876 = vunpack.c.h.b16 %v1842
      %v1877 = vunpack.c.l.b16 %v1843
      %v1878 = vunpack.c.h.b16 %v1843
      %v1879 = vunpack.c.l.b16 %v1844
      %v1880 = vunpack.c.h.b16 %v1844
      %v1881 = vunpack.c.l.b16 %v1845
      %v1882 = vunpack.c.h.b16 %v1845
      %v1883 = vunpack.c.l.b16 %v1846
      %v1884 = vunpack.c.h.b16 %v1846
      %v1885 = vunpack.c.l.b16 %v1847
      %v1886 = vunpack.c.h.b16 %v1847
      %v1887 = vunpack.c.l.b16 %v1848
      %v1888 = vunpack.c.h.b16 %v1848
      %v1889 = vunpack.c.l.b16 %v1849
      %v1890 = vunpack.c.h.b16 %v1849
      %v1891 = vunpack.c.l.b16 %v1850
      %v1892 = vunpack.c.h.b16 %v1850
      %v1893 = vunpack.c.l.b16 %v1851
      %v1894 = vunpack.c.h.b16 %v1851
      %v1895 = vunpack.c.l.b16 %v1852
      %v1896 = vunpack.c.h.b16 %v1852
      %v1897 = vunpack.c.l.b16 %v1853
      %v1898 = vunpack.c.h.b16 %v1853
      %v1899 = vunpack.c.l.b16 %v1854
      %v1900 = vunpack.c.h.b16 %v1854
      %v1901 = vunpack.c.l.b16 %v1855
      %v1902 = vunpack.c.h.b16 %v1855
      %v1903 = vunpack.c.l.b16 %v1856
      %v1904 = vunpack.c.h.b16 %v1856
      %v1905 = vpack.c.b16 %v1873, %v1873
      %v1906 = vpack.c.b16 %v1874, %v1874
      %v1907 = vpack.c.b16 %v1875, %v1875
      %v1908 = vpack.c.b16 %v1876, %v1876
      %v1909 = vpack.c.b16 %v1877, %v1877
      %v1910 = vpack.c.b16 %v1878, %v1878
      %v1911 = vpack.c.b16 %v1879, %v1879
      %v1912 = vpack.c.b16 %v1880, %v1880
      %v1913 = vpack.c.b16 %v1881, %v1881
      %v1914 = vpack.c.b16 %v1882, %v1882
      %v1915 = vpack.c.b16 %v1883, %v1883
      %v1916 = vpack.c.b16 %v1884, %v1884
      %v1917 = vpack.c.b16 %v1885, %v1885
      %v1918 = vpack.c.b16 %v1886, %v1886
      %v1919 = vpack.c.b16 %v1887, %v1887
      %v1920 = vpack.c.b16 %v1888, %v1888
      %v1921 = vpack.c.b16 %v1889, %v1889
      %v1922 = vpack.c.b16 %v1890, %v1890
      %v1923 = vpack.c.b16 %v1891, %v1891
      %v1924 = vpack.c.b16 %v1892, %v1892
      %v1925 = vpack.c.b16 %v1893, %v1893
      %v1926 = vpack.c.b16 %v1894, %v1894
      %v1927 = vpack.c.b16 %v1895, %v1895
      %v1928 = vpack.c.b16 %v1896, %v1896
      %v1929 = vpack.c.b16 %v1897, %v1897
      %v1930 = vpack.c.b16 %v1898, %v1898
      %v1931 = vpack.c.b16 %v1899, %v1899
      %v1932 = vpack.c.b16 %v1900, %v1900
      %v1933 = vpack.c.b16 %v1901, %v1901
      %v1934 = vpack.c.b16 %v1902, %v1902
      %v1935 = vpack.c.b16 %v1903, %v1903
      %v1936 = vpack.c.b16 %v1904, %v1904
      %vm1969 = vcmask 257024
      %1970 = vst.msk [vmem:[%s327] sm:$0xf] %vm1969, %v1905
      %1971 = vst.msk [vmem:[%s327 + $0x4] sm:$0xf] %vm1969, %v1906
      %1972 = vst.msk [vmem:[%s327 + $0x8] sm:$0xf] %vm1969, %v1907
      %1973 = vst.msk [vmem:[%s327 + $0xc] sm:$0xf] %vm1969, %v1908
      %1974 = vst.msk [vmem:[%s327 + $0x10] sm:$0xf] %vm1969, %v1909
      %1975 = vst.msk [vmem:[%s327 + $0x14] sm:$0xf] %vm1969, %v1910
      %1976 = vst.msk [vmem:[%s327 + $0x18] sm:$0xf] %vm1969, %v1911
      %1977 = vst.msk [vmem:[%s327 + $0x1c] sm:$0xf] %vm1969, %v1912
      %1978 = vst.msk [vmem:[%s327 + $0x20] sm:$0xf] %vm1969, %v1913
      %1979 = vst.msk [vmem:[%s327 + $0x24] sm:$0xf] %vm1969, %v1914
      %1980 = vst.msk [vmem:[%s327 + $0x28] sm:$0xf] %vm1969, %v1915
      %1981 = vst.msk [vmem:[%s327 + $0x2c] sm:$0xf] %vm1969, %v1916
      %1982 = vst.msk [vmem:[%s327 + $0x30] sm:$0xf] %vm1969, %v1917
      %1983 = vst.msk [vmem:[%s327 + $0x34] sm:$0xf] %vm1969, %v1918
      %1984 = vst.msk [vmem:[%s327 + $0x38] sm:$0xf] %vm1969, %v1919
      %1985 = vst.msk [vmem:[%s327 + $0x3c] sm:$0xf] %vm1969, %v1920
      %1986 = vst.msk [vmem:[%s327 + $0x40] sm:$0xf] %vm1969, %v1921
      %1987 = vst.msk [vmem:[%s327 + $0x44] sm:$0xf] %vm1969, %v1922
      %1988 = vst.msk [vmem:[%s327 + $0x48] sm:$0xf] %vm1969, %v1923
      %1989 = vst.msk [vmem:[%s327 + $0x4c] sm:$0xf] %vm1969, %v1924
      %1990 = vst.msk [vmem:[%s327 + $0x50] sm:$0xf] %vm1969, %v1925
      %1991 = vst.msk [vmem:[%s327 + $0x54] sm:$0xf] %vm1969, %v1926
      %1992 = vst.msk [vmem:[%s327 + $0x58] sm:$0xf] %vm1969, %v1927
      %1993 = vst.msk [vmem:[%s327 + $0x5c] sm:$0xf] %vm1969, %v1928
      %1994 = vst.msk [vmem:[%s327 + $0x60] sm:$0xf] %vm1969, %v1929
      %1995 = vst.msk [vmem:[%s327 + $0x64] sm:$0xf] %vm1969, %v1930
      %1996 = vst.msk [vmem:[%s327 + $0x68] sm:$0xf] %vm1969, %v1931
      %1997 = vst.msk [vmem:[%s327 + $0x6c] sm:$0xf] %vm1969, %v1932
      %1998 = vst.msk [vmem:[%s327 + $0x70] sm:$0xf] %vm1969, %v1933
      %1999 = vst.msk [vmem:[%s327 + $0x74] sm:$0xf] %vm1969, %v1934
      %2000 = vst.msk [vmem:[%s327 + $0x78] sm:$0xf] %vm1969, %v1935
      %2001 = vst.msk [vmem:[%s327 + $0x7c] sm:$0xf] %vm1969, %v1936
      %s2002 = smul.u32 32, %s23
      %p2003 = scmp.lt.s32.totalorder %s22, 1
      %s2004 = scalar_select %p2003, %s22, 1
      %p2005 = scmp.lt.s32.totalorder %s2002, 31
      %s2006 = scalar_select %p2005, %s2002, 31
      %s2007 = smul.addr %s2004, 32
      %s2008 = sadd.s32 %s2006, %s2007
      %s2009 = smul.addr %s2008, 4
      %s2010 = scalar_lea.vmem %s6, %s2009
      // Predicated region
      $region45: #{self_attn_non_local.1} parent=43 // pred_check
        %p2011 = pneg %p193
      $region46: #{self_attn_non_local.1} parent=43 // pred_check_branch
        %2013 = sbr.rel (%p2011) target = $region48
      $region47: #{self_attn_non_local.1} parent=43 // pred_region
        %s2014 = smul.u32 32, %s23
      $region48: #{self_attn_non_local.1} parent=43 // pred_fallthru
        _
    $region44: #{self_attn_non_local.1} parent=5 // pred_fallthru
      _
    %p2015 = scmp.le.s32.totalorder 2, %s13
    // Predicated region
    $region49: #{self_attn_non_local.1} parent=5 // pred_check
      %p2016 = pneg %p2015
    $region50: #{self_attn_non_local.1} parent=5 // pred_check_branch
      %2018 = sbr.rel (%p2016) target = $region52
    $region51: #{self_attn_non_local.1} parent=5 // pred_region
      %s2019 = ssub.s32 %s13, 2
      // Predicated region
      $region53: #{self_attn_non_local.1} parent=51 // pred_check
        %p2020 = pneg %p199
      $region54: #{self_attn_non_local.1} parent=51 // pred_check_branch
        %2022 = sbr.rel (%p2020) target = $region56
      $region55: #{self_attn_non_local.1} parent=51 // pred_region
        %s2023 = smul.u32 32, %s25
        %p2024 = scmp.lt.s32.totalorder %s24, 1
        %s2025 = scalar_select %p2024, %s24, 1
        %p2026 = scmp.lt.s32.totalorder %s2023, 31
        %s2027 = scalar_select %p2026, %s2023, 31
        %s2028 = smul.addr %s2025, 32
        %s2029 = sadd.s32 %s2027, %s2028
        %s2030 = smul.addr %s2029, 4
        %s2031 = scalar_lea.vmem %s6, %s2030
      $region56: #{self_attn_non_local.1} parent=51 // pred_fallthru
        _
    $region52: #{self_attn_non_local.1} parent=5 // pred_fallthru
      _
  $region6: #{self_attn_non_local.1} parent=0 // loop_footer
    %s17 = sadd.s32 1, %s13
  $region7: #{self_attn_non_local.1} parent=0 // loop_footer_branch
    %12 = sbr.rel target = $region3
  $region8: #{self_attn_non_local.1} parent=0 // loop_exit
    _

</llo_original>
